<compile_context>
chip_gen: v7x
topology: tpu7x:2x2x1
jax: 0.10.0
libtpu: 0.0.40
codegen_flags: <defaults>
</compile_context>

<pallas_src>
import functools

import jax
import jax.numpy as jnp
from jax.experimental import pallas as pl
from jax.experimental.pallas import tpu as pltpu


def _round_up(x, m):
    return (x + m - 1) // m * m


# ----------------------------------------------------------------------------
# Pallas kernel: chained  z = act(z @ W_i + b_i), all layers in one call
# ----------------------------------------------------------------------------
def _chain_kernel(*refs, acts):
    x_ref = refs[0]
    o_ref = refs[-1]
    z = x_ref[...]                          # bf16 (TM, K0p)
    n_layers = len(acts)
    for i, act in enumerate(acts):
        w = refs[1 + 2 * i][...]            # bf16 (Kp, Np), whole array in VMEM
        b = refs[2 + 2 * i][...]            # f32  (1, Np)
        z = jnp.dot(z, w, preferred_element_type=jnp.float32) + b
        if act == "relu":
            z = jnp.maximum(z, 0.0)
        elif act == "elu":
            # alpha=1 ELU; exp only on the <=0 branch (no inf in dead branch).
            z = jnp.where(z > 0.0, z, jnp.exp(jnp.minimum(z, 0.0)) - 1.0)
        if i + 1 < n_layers:
            z = z.astype(jnp.bfloat16)      # next MXU matmul in bf16
    o_ref[...] = z.astype(o_ref.dtype)      # bf16 for intermediates, f32 at the end


def matmul_chain(x, layers, acts, n_out, *, tm=256, out_dtype=jnp.float32):
    """x: (M, K0); layers: [(wp bf16 (Kp,Np), bp f32 (1,Np)), ...] PRE-padded to
    multiples of 128 (see prepare_params); acts: per-layer activation.
    n_out: valid (unpadded) width of the last layer.

    Runs the whole chain in one pallas_call, tiled over rows (parallel grid).
    Returns (M, n_out) with dtype out_dtype.
    """
    M, K0 = x.shape
    K0p = layers[0][0].shape[0]
    assert K0p >= K0 and K0p % 128 == 0, (K0, K0p)

    xp = x.astype(jnp.bfloat16)
    if K0p != K0:
        xp = jnp.pad(xp, ((0, 0), (0, K0p - K0)))

    # Row tiling: single full block for tiny M; otherwise <=tm rows per tile and
    # always >=2 tiles so the "parallel" axis can shard across v7x's 2 TCs.
    if M <= 8:
        tm_eff = M
    else:
        tm_eff = min(tm, _round_up(pl.cdiv(M, 2), 8))
    grid_m = pl.cdiv(M, tm_eff)
    Mp = grid_m * tm_eff
    if Mp != M:
        # Explicit row padding: last tile is fully in-bounds (no masked vst).
        xp = jnp.pad(xp, ((0, Mp - M), (0, 0)))

    in_specs = [pl.BlockSpec((tm_eff, K0p), lambda i: (i, 0))]
    operands = [xp]
    for wp, bp in layers:
        # Grid-invariant weights/bias: whole array resident in VMEM, single copy
        # (avoids double-buffering constant operands).
        in_specs.append(pl.BlockSpec(memory_space=pltpu.MemorySpace.VMEM))
        in_specs.append(pl.BlockSpec(memory_space=pltpu.MemorySpace.VMEM))
        operands += [wp, bp]

    Np_last = layers[-1][0].shape[1]

    out = pl.pallas_call(
        functools.partial(_chain_kernel, acts=tuple(acts)),
        grid=(grid_m,),
        in_specs=in_specs,
        out_specs=pl.BlockSpec((tm_eff, Np_last), lambda i: (i, 0)),
        out_shape=jax.ShapeDtypeStruct((Mp, Np_last), out_dtype),
        compiler_params=pltpu.CompilerParams(
            dimension_semantics=("parallel",),
            vmem_limit_bytes=48 * 1024 * 1024),
    )(*operands)

    if Mp != M:
        out = out[:M]
    if Np_last != n_out:
        out = out[:, :n_out]
    return out


# ----------------------------------------------------------------------------
# Conv via im2col (plain-JAX glue, bf16) + Pallas matmul kernel (hot path)
# ----------------------------------------------------------------------------
def _im2col(x_nhwc, k, stride):
    # TODO(synk): gather the kxk window in-kernel instead of materializing the
    # expanded patch matrix in HBM.
    N, H, W, C = x_nhwc.shape
    Ho = (H - k) // stride + 1
    Wo = (W - k) // stride + 1
    cols = []
    for kh in range(k):
        for kw in range(k):
            cols.append(x_nhwc[:, kh:kh + stride * (Ho - 1) + 1:stride,
                               kw:kw + stride * (Wo - 1) + 1:stride, :])
    # column order [c][kh][kw] matches torch weight.reshape(Cout, Cin*KH*KW)
    p = jnp.stack(cols, axis=-1)                       # (N, Ho, Wo, C, k*k)
    return p.reshape(N * Ho * Wo, C * k * k), (N, Ho, Wo)


def conv2d_act(x_nhwc, wp, bp, k, stride, cout, *, act="relu", tm=512):
    """Conv with pre-packed weight (Kp,Np) bf16 / bias (1,Np) f32; bf16 output."""
    patches, (N, Ho, Wo) = _im2col(x_nhwc.astype(jnp.bfloat16), k, stride)
    out = matmul_chain(patches, [(wp, bp)], [act], cout, tm=tm,
                       out_dtype=jnp.bfloat16)
    return out.reshape(N, Ho, Wo, cout)


# ----------------------------------------------------------------------------
# One-time weight packing (hoisted out of the per-forward trace)
# ----------------------------------------------------------------------------
def _pack_dense(w_kn, b_n):
    """Pad (K,N) weight to bf16 (Kp,Np) and bias to f32 (1,Np), 128-aligned."""
    K, N = w_kn.shape
    Kp, Np = _round_up(K, 128), _round_up(N, 128)
    wp = jnp.pad(jnp.asarray(w_kn, jnp.float32),
                 ((0, Kp - K), (0, Np - N))).astype(jnp.bfloat16)
    bp = jnp.pad(jnp.asarray(b_n, jnp.float32).reshape(1, N),
                 ((0, 0), (0, Np - N)))
    return wp, bp


def prepare_params(params, in_hw):
    """Pack PyTorch-layout DQNet weights ONCE into Pallas-ready operands.

    Does: OIHW -> (Cin*KH*KW, Cout) transpose, x/256 fold into conv1, zero-pad
    to multiples of 128, bf16 cast, fc1 NCHW->NHWC column permute, and (when the
    conv3 output is 1x1) folding conv3 into the FC chain.  None of this runs in
    the per-step forward trace.
    """
    H, W = in_hw

    def out_hw(h, w, k, s):
        return (h - k) // s + 1, (w - k) // s + 1

    c1, _, k1, _ = params["w1"].shape
    c2, _, k2, _ = params["w2"].shape
    c3, _, k3, _ = params["w3"].shape
    f1 = params["wfc1"].shape[0]
    na = params["wfc2"].shape[0]

    Ho1, Wo1 = out_hw(H, W, k1, 4)
    Ho2, Wo2 = out_hw(Ho1, Wo1, k2, 2)
    Ho3, Wo3 = out_hw(Ho2, Wo2, k3, 1)
    head_fused = (Ho3 * Wo3 == 1)

    def conv_mat(w_oihw):   # OIHW -> (Cin*KH*KW, Cout), matches _im2col columns
        co, ci, kh, kw = w_oihw.shape
        return jnp.asarray(w_oihw, jnp.float32).reshape(co, ci * kh * kw).T

    w1m = conv_mat(params["w1"]) * jnp.float32(1.0 / 256.0)   # fold x/256
    w2m = conv_mat(params["w2"])

    if head_fused:
        # conv3's kxk window covers the whole conv2 map -> conv3 is a dense
        # layer on the NHWC-flattened conv2 output; rows ordered (kh, kw, c).
        w3m = jnp.transpose(jnp.asarray(params["w3"], jnp.float32),
                            (2, 3, 1, 0)).reshape(k3 * k3 * c2, c3)
        wfc1m = jnp.asarray(params["wfc1"], jnp.float32).T    # 1x1: no permute
    else:
        w3m = conv_mat(params["w3"])
        # permute fc1 input columns from torch NCHW flatten to NHWC flatten
        wfc1m = (jnp.asarray(params["wfc1"], jnp.float32)
                 .reshape(f1, c3, Ho3, Wo3).transpose(0, 2, 3, 1)
                 .reshape(f1, -1).T)
    wfc2m = jnp.asarray(params["wfc2"], jnp.float32).T

    w1p, b1p = _pack_dense(w1m, params["b1"])
    w2p, b2p = _pack_dense(w2m, params["b2"])
    w3p, b3p = _pack_dense(w3m, params["b3"])
    wfc1p, bfc1p = _pack_dense(wfc1m, params["bfc1"])
    wfc2p, bfc2p = _pack_dense(wfc2m, params["bfc2"])

    packed = {"w1": w1p, "b1": b1p, "w2": w2p, "b2": b2p, "w3": w3p, "b3": b3p,
              "wfc1": wfc1p, "bfc1": bfc1p, "wfc2": wfc2p, "bfc2": bfc2p}
    cfg = {"geom": (Ho1, Wo1, Ho2, Wo2, Ho3, Wo3), "head_fused": head_fused,
           "c1": c1, "c2": c2, "c3": c3, "na": na}
    return packed, cfg


# ----------------------------------------------------------------------------
# DQNet forward (packed weights; cfg is static Python config)
# ----------------------------------------------------------------------------
def dqnet_forward(x_nchw, packed, cfg):
    Ho1, Wo1, Ho2, Wo2, Ho3, Wo3 = cfg["geom"]
    x = jnp.transpose(x_nchw, (0, 2, 3, 1))             # NCHW -> NHWC
    # fx = x.float()/256  --> the /256 is folded into conv1's packed weight.
    h = conv2d_act(x, packed["w1"], packed["b1"], 8, 4, cfg["c1"], tm=512)
    h = conv2d_act(h, packed["w2"], packed["b2"], 4, 2, cfg["c2"], tm=512)

    N = h.shape[0]
    if cfg["head_fused"]:
        # conv3 output is 1x1 spatial: conv3 acts as a dense layer on the
        # NHWC-flattened conv2 output -> conv3+fc1+fc2 fused in ONE Pallas call.
        h2 = h.reshape(N, Ho2 * Wo2 * cfg["c2"])
        out = matmul_chain(
            h2,
            [(packed["w3"], packed["b3"]),
             (packed["wfc1"], packed["bfc1"]),
             (packed["wfc2"], packed["bfc2"])],
            ["relu", "elu", "none"], cfg["na"],
            tm=256, out_dtype=jnp.float32)
    else:
        # General case: conv3 alone (bf16 out), then fc1+fc2 fused.
        patches3, _ = _im2col(h, 3, 1)
        h3 = matmul_chain(patches3, [(packed["w3"], packed["b3"])], ["relu"],
                          cfg["c3"], tm=512, out_dtype=jnp.bfloat16)
        h3 = h3.reshape(N, Ho3 * Wo3 * cfg["c3"])        # NHWC flatten
        out = matmul_chain(
            h3,
            [(packed["wfc1"], packed["bfc1"]),
             (packed["wfc2"], packed["bfc2"])],
            ["elu", "none"], cfg["na"],
            tm=256, out_dtype=jnp.float32)
    return out


def init_params(key, in_channels, conv_features, num_actions):
    ks = jax.random.split(key, 10)
    s = 0.05
    return {
        # conv weights in PyTorch OIHW layout
        "w1": jax.random.normal(ks[0], (32, in_channels, 8, 8), jnp.float32) * s,
        "b1": jax.random.normal(ks[1], (32,), jnp.float32) * s,
        "w2": jax.random.normal(ks[2], (64, 32, 4, 4), jnp.float32) * s,
        "b2": jax.random.normal(ks[3], (64,), jnp.float32) * s,
        "w3": jax.random.normal(ks[4], (64, 64, 3, 3), jnp.float32) * s,
        "b3": jax.random.normal(ks[5], (64,), jnp.float32) * s,
        # fc weights in PyTorch (out, in) layout
        "wfc1": jax.random.normal(ks[6], (512, conv_features), jnp.float32) * s,
        "bfc1": jax.random.normal(ks[7], (512,), jnp.float32) * s,
        "wfc2": jax.random.normal(ks[8], (num_actions, 512), jnp.float32) * s,
        "bfc2": jax.random.normal(ks[9], (num_actions,), jnp.float32) * s,
    }


if __name__ == "__main__":
    key = jax.random.PRNGKey(0)
    k_x, k_p = jax.random.split(key)

    batch, in_channels, H, W = 2, 4, 36, 36
    num_actions = 6

    # conv spatial: 36 -> 8 -> 3 -> 1  =>  conv_features = 64 * 1 * 1
    conv_features = 64

    # raw frames (uint8-valued), like Atari observations
    x = jax.random.randint(k_x, (batch, in_channels, H, W), 0, 256,
                           dtype=jnp.int32).astype(jnp.uint8)

    params = init_params(k_p, in_channels, conv_features, num_actions)

    # One-time weight packing (outside the per-step jit).
    packed, cfg = prepare_params(params, (H, W))

    fwd = jax.jit(functools.partial(dqnet_forward, cfg=cfg))
    q = fwd(x, packed)
    q = jax.block_until_ready(q)

    assert q.shape == (batch, num_actions), q.shape
    assert q.dtype == jnp.float32
    assert bool(jnp.all(jnp.isfinite(q)))
    print("KERNEL_OK")
</pallas_src>

<mosaic_0001>
module attributes {stable_mosaic.version = 11 : i64} {
  func.func @_chain_kernel(%arg0: i32, %arg1: memref<64x256xbf16, #tpu.memory_space<vmem>>, %arg2: memref<256x128xbf16, #tpu.memory_space<vmem>>, %arg3: memref<1x128xf32, #tpu.memory_space<vmem>>, %arg4: memref<64x128xbf16, #tpu.memory_space<vmem>>) attributes {dimension_semantics = [#tpu.dimension_semantics<parallel>], iteration_bounds = array<i64: 2>, scalar_prefetch = 0 : i64, scratch_operands = 0 : i64, tpu.core_type = #tpu.core_type<tc>, window_params = [{transform_indices = @transform_0, window_bounds = array<i64: 64, 256>}, {pipeline_mode = #tpu.pipeline_mode<synchronous>, transform_indices = @transform_1, window_bounds = array<i64: 256, 128>}, {pipeline_mode = #tpu.pipeline_mode<synchronous>, transform_indices = @transform_2, window_bounds = array<i64: 1, 128>}, {transform_indices = @transform_3, window_bounds = array<i64: 64, 128>}]} {
    %c0 = arith.constant 0 : index
    %c0_0 = arith.constant 0 : index
    %0 = vector.load %arg1[%c0, %c0_0] : memref<64x256xbf16, #tpu.memory_space<vmem>>, vector<64x256xbf16>
    %c0_1 = arith.constant 0 : index
    %c0_2 = arith.constant 0 : index
    %1 = vector.load %arg2[%c0_1, %c0_2] : memref<256x128xbf16, #tpu.memory_space<vmem>>, vector<256x128xbf16>
    %c0_3 = arith.constant 0 : index
    %c0_4 = arith.constant 0 : index
    %2 = vector.load %arg3[%c0_3, %c0_4] : memref<1x128xf32, #tpu.memory_space<vmem>>, vector<1x128xf32>
    %cst = arith.constant dense<0.000000e+00> : vector<64x128xf32>
    %3 = tpu.matmul %0, %1, %cst {dimension_numbers = #tpu.dot_dimension_numbers<[1], [0], [0], [1], [0, 0, 1, 1], [], []>} : vector<64x256xbf16>, vector<256x128xbf16>, vector<64x128xf32> -> vector<64x128xf32>
    %4 = vector.broadcast %2 : vector<1x128xf32> to vector<64x128xf32>
    %5 = arith.addf %3, %4 : vector<64x128xf32>
    %cst_5 = arith.constant 0.000000e+00 : f32
    %6 = vector.broadcast %cst_5 : f32 to vector<64x128xf32>
    %7 = arith.maximumf %5, %6 : vector<64x128xf32>
    %8 = arith.truncf %7 : vector<64x128xf32> to vector<64x128xbf16>
    %c0_6 = arith.constant 0 : index
    %c0_7 = arith.constant 0 : index
    %9 = vector.load %arg4[%c0_6, %c0_7] : memref<64x128xbf16, #tpu.memory_space<vmem>>, vector<64x128xbf16>
    tpu.vector_store %arg4[%c0_6, %c0_7], %8 {strides = array<i32>} : memref<64x128xbf16, #tpu.memory_space<vmem>>, vector<64x128xbf16>,
    return
  }
  func.func @transform_0(%arg0: i32) -> (i32, i32) {
    %c0_i32 = arith.constant 0 : i32
    %c0_i32_0 = arith.constant 0 : i32
    return %arg0, %c0_i32 : i32, i32
  }
  func.func @transform_1(%arg0: i32) -> (i32, i32) {
    %c0_i32 = arith.constant 0 : i32
    %c0_i32_0 = arith.constant 0 : i32
    %c0_i32_1 = arith.constant 0 : i32
    return %c0_i32, %c0_i32_0 : i32, i32
  }
  func.func @transform_2(%arg0: i32) -> (i32, i32) {
    %c0_i32 = arith.constant 0 : i32
    %c0_i32_0 = arith.constant 0 : i32
    %c0_i32_1 = arith.constant 0 : i32
    return %c0_i32, %c0_i32_0 : i32, i32
  }
  func.func @transform_3(%arg0: i32) -> (i32, i32) {
    %c0_i32 = arith.constant 0 : i32
    %c0_i32_0 = arith.constant 0 : i32
    return %arg0, %c0_i32 : i32, i32
  }
}

module attributes {stable_mosaic.version = 11 : i64} {
  func.func @_chain_kernel(%arg0: i32, %arg1: memref<16x512xbf16, #tpu.memory_space<vmem>>, %arg2: memref<512x128xbf16, #tpu.memory_space<vmem>>, %arg3: memref<1x128xf32, #tpu.memory_space<vmem>>, %arg4: memref<16x128xbf16, #tpu.memory_space<vmem>>) attributes {dimension_semantics = [#tpu.dimension_semantics<parallel>], iteration_bounds = array<i64: 2>, scalar_prefetch = 0 : i64, scratch_operands = 0 : i64, tpu.core_type = #tpu.core_type<tc>, window_params = [{transform_indices = @transform_0, window_bounds = array<i64: 16, 512>}, {pipeline_mode = #tpu.pipeline_mode<synchronous>, transform_indices = @transform_1, window_bounds = array<i64: 512, 128>}, {pipeline_mode = #tpu.pipeline_mode<synchronous>, transform_indices = @transform_2, window_bounds = array<i64: 1, 128>}, {transform_indices = @transform_3, window_bounds = array<i64: 16, 128>}]} {
    %c0 = arith.constant 0 : index
    %c0_0 = arith.constant 0 : index
    %0 = vector.load %arg1[%c0, %c0_0] : memref<16x512xbf16, #tpu.memory_space<vmem>>, vector<16x512xbf16>
    %c0_1 = arith.constant 0 : index
    %c0_2 = arith.constant 0 : index
    %1 = vector.load %arg2[%c0_1, %c0_2] : memref<512x128xbf16, #tpu.memory_space<vmem>>, vector<512x128xbf16>
    %c0_3 = arith.constant 0 : index
    %c0_4 = arith.constant 0 : index
    %2 = vector.load %arg3[%c0_3, %c0_4] : memref<1x128xf32, #tpu.memory_space<vmem>>, vector<1x128xf32>
    %cst = arith.constant dense<0.000000e+00> : vector<16x128xf32>
    %3 = tpu.matmul %0, %1, %cst {dimension_numbers = #tpu.dot_dimension_numbers<[1], [0], [0], [1], [0, 0, 1, 1], [], []>} : vector<16x512xbf16>, vector<512x128xbf16>, vector<16x128xf32> -> vector<16x128xf32>
    %4 = vector.broadcast %2 : vector<1x128xf32> to vector<16x128xf32>
    %5 = arith.addf %3, %4 : vector<16x128xf32>
    %cst_5 = arith.constant 0.000000e+00 : f32
    %6 = vector.broadcast %cst_5 : f32 to vector<16x128xf32>
    %7 = arith.maximumf %5, %6 : vector<16x128xf32>
    %8 = arith.truncf %7 : vector<16x128xf32> to vector<16x128xbf16>
    %c0_6 = arith.constant 0 : index
    %c0_7 = arith.constant 0 : index
    %9 = vector.load %arg4[%c0_6, %c0_7] : memref<16x128xbf16, #tpu.memory_space<vmem>>, vector<16x128xbf16>
    tpu.vector_store %arg4[%c0_6, %c0_7], %8 {strides = array<i32>} : memref<16x128xbf16, #tpu.memory_space<vmem>>, vector<16x128xbf16>,
    return
  }
  func.func @transform_0(%arg0: i32) -> (i32, i32) {
    %c0_i32 = arith.constant 0 : i32
    %c0_i32_0 = arith.constant 0 : i32
    return %arg0, %c0_i32 : i32, i32
  }
  func.func @transform_1(%arg0: i32) -> (i32, i32) {
    %c0_i32 = arith.constant 0 : i32
    %c0_i32_0 = arith.constant 0 : i32
    %c0_i32_1 = arith.constant 0 : i32
    return %c0_i32, %c0_i32_0 : i32, i32
  }
  func.func @transform_2(%arg0: i32) -> (i32, i32) {
    %c0_i32 = arith.constant 0 : i32
    %c0_i32_0 = arith.constant 0 : i32
    %c0_i32_1 = arith.constant 0 : i32
    return %c0_i32, %c0_i32_0 : i32, i32
  }
  func.func @transform_3(%arg0: i32) -> (i32, i32) {
    %c0_i32 = arith.constant 0 : i32
    %c0_i32_0 = arith.constant 0 : i32
    return %arg0, %c0_i32 : i32, i32
  }
}

module attributes {stable_mosaic.version = 11 : i64} {
  func.func @_chain_kernel(%arg0: i32, %arg1: memref<2x640xbf16, #tpu.memory_space<vmem>>, %arg2: memref<640x128xbf16, #tpu.memory_space<vmem>>, %arg3: memref<1x128xf32, #tpu.memory_space<vmem>>, %arg4: memref<128x512xbf16, #tpu.memory_space<vmem>>, %arg5: memref<1x512xf32, #tpu.memory_space<vmem>>, %arg6: memref<512x128xbf16, #tpu.memory_space<vmem>>, %arg7: memref<1x128xf32, #tpu.memory_space<vmem>>, %arg8: memref<2x128xf32, #tpu.memory_space<vmem>>) attributes {dimension_semantics = [#tpu.dimension_semantics<parallel>], iteration_bounds = array<i64: 1>, scalar_prefetch = 0 : i64, scratch_operands = 0 : i64, tpu.core_type = #tpu.core_type<tc>, window_params = [{transform_indices = @transform_0, window_bounds = array<i64: 2, 640>}, {pipeline_mode = #tpu.pipeline_mode<synchronous>, transform_indices = @transform_1, window_bounds = array<i64: 640, 128>}, {pipeline_mode = #tpu.pipeline_mode<synchronous>, transform_indices = @transform_2, window_bounds = array<i64: 1, 128>}, {pipeline_mode = #tpu.pipeline_mode<synchronous>, transform_indices = @transform_3, window_bounds = array<i64: 128, 512>}, {pipeline_mode = #tpu.pipeline_mode<synchronous>, transform_indices = @transform_4, window_bounds = array<i64: 1, 512>}, {pipeline_mode = #tpu.pipeline_mode<synchronous>, transform_indices = @transform_5, window_bounds = array<i64: 512, 128>}, {pipeline_mode = #tpu.pipeline_mode<synchronous>, transform_indices = @transform_6, window_bounds = array<i64: 1, 128>}, {transform_indices = @transform_7, window_bounds = array<i64: 2, 128>}]} {
    %c0 = arith.constant 0 : index
    %c0_0 = arith.constant 0 : index
    %0 = vector.load %arg1[%c0, %c0_0] : memref<2x640xbf16, #tpu.memory_space<vmem>>, vector<2x640xbf16>
    %c0_1 = arith.constant 0 : index
    %c0_2 = arith.constant 0 : index
    %1 = vector.load %arg2[%c0_1, %c0_2] : memref<640x128xbf16, #tpu.memory_space<vmem>>, vector<640x128xbf16>
    %c0_3 = arith.constant 0 : index
    %c0_4 = arith.constant 0 : index
    %2 = vector.load %arg3[%c0_3, %c0_4] : memref<1x128xf32, #tpu.memory_space<vmem>>, vector<1x128xf32>
    %cst = arith.constant dense<0.000000e+00> : vector<2x128xf32>
    %3 = tpu.matmul %0, %1, %cst {dimension_numbers = #tpu.dot_dimension_numbers<[1], [0], [0], [1], [0, 0, 1, 1], [], []>} : vector<2x640xbf16>, vector<640x128xbf16>, vector<2x128xf32> -> vector<2x128xf32>
    %4 = vector.broadcast %2 : vector<1x128xf32> to vector<2x128xf32>
    %5 = arith.addf %3, %4 : vector<2x128xf32>
    %cst_5 = arith.constant 0.000000e+00 : f32
    %6 = vector.broadcast %cst_5 : f32 to vector<2x128xf32>
    %7 = arith.maximumf %5, %6 : vector<2x128xf32>
    %8 = arith.truncf %7 : vector<2x128xf32> to vector<2x128xbf16>
    %c0_6 = arith.constant 0 : index
    %c0_7 = arith.constant 0 : index
    %9 = vector.load %arg4[%c0_6, %c0_7] : memref<128x512xbf16, #tpu.memory_space<vmem>>, vector<128x512xbf16>
    %c0_8 = arith.constant 0 : index
    %c0_9 = arith.constant 0 : index
    %10 = vector.load %arg5[%c0_8, %c0_9] : memref<1x512xf32, #tpu.memory_space<vmem>>, vector<1x512xf32>
    %cst_10 = arith.constant dense<0.000000e+00> : vector<2x512xf32>
    %11 = tpu.matmul %8, %9, %cst_10 {dimension_numbers = #tpu.dot_dimension_numbers<[1], [0], [0], [1], [0, 0, 1, 1], [], []>} : vector<2x128xbf16>, vector<128x512xbf16>, vector<2x512xf32> -> vector<2x512xf32>
    %12 = vector.broadcast %10 : vector<1x512xf32> to vector<2x512xf32>
    %13 = arith.addf %11, %12 : vector<2x512xf32>
    %cst_11 = arith.constant 0.000000e+00 : f32
    %14 = vector.broadcast %cst_11 : f32 to vector<2x512xf32>
    %15 = arith.cmpf ogt, %13, %14 : vector<2x512xf32>
    %cst_12 = arith.constant 0.000000e+00 : f32
    %16 = vector.broadcast %cst_12 : f32 to vector<2x512xf32>
    %17 = arith.minimumf %13, %16 : vector<2x512xf32>
    %18 = math.exp %17 : vector<2x512xf32>
    %cst_13 = arith.constant 1.000000e+00 : f32
    %19 = vector.broadcast %cst_13 : f32 to vector<2x512xf32>
    %20 = arith.subf %18, %19 : vector<2x512xf32>
    %21 = arith.select %15, %13, %20 : vector<2x512xi1>, vector<2x512xf32>
    %22 = arith.truncf %21 : vector<2x512xf32> to vector<2x512xbf16>
    %c0_14 = arith.constant 0 : index
    %c0_15 = arith.constant 0 : index
    %23 = vector.load %arg6[%c0_14, %c0_15] : memref<512x128xbf16, #tpu.memory_space<vmem>>, vector<512x128xbf16>
    %c0_16 = arith.constant 0 : index
    %c0_17 = arith.constant 0 : index
    %24 = vector.load %arg7[%c0_16, %c0_17] : memref<1x128xf32, #tpu.memory_space<vmem>>, vector<1x128xf32>
    %cst_18 = arith.constant dense<0.000000e+00> : vector<2x128xf32>
    %25 = tpu.matmul %22, %23, %cst_18 {dimension_numbers = #tpu.dot_dimension_numbers<[1], [0], [0], [1], [0, 0, 1, 1], [], []>} : vector<2x512xbf16>, vector<512x128xbf16>, vector<2x128xf32> -> vector<2x128xf32>
    %26 = vector.broadcast %24 : vector<1x128xf32> to vector<2x128xf32>
    %27 = arith.addf %25, %26 : vector<2x128xf32>
    %c0_19 = arith.constant 0 : index
    %c0_20 = arith.constant 0 : index
    %28 = vector.load %arg8[%c0_19, %c0_20] : memref<2x128xf32, #tpu.memory_space<vmem>>, vector<2x128xf32>
    tpu.vector_store %arg8[%c0_19, %c0_20], %27 {strides = array<i32>} : memref<2x128xf32, #tpu.memory_space<vmem>>, vector<2x128xf32>,
    return
  }
  func.func @transform_0(%arg0: i32) -> (i32, i32) {
    %c0_i32 = arith.constant 0 : i32
    %c0_i32_0 = arith.constant 0 : i32
    return %arg0, %c0_i32 : i32, i32
  }
  func.func @transform_1(%arg0: i32) -> (i32, i32) {
    %c0_i32 = arith.constant 0 : i32
    %c0_i32_0 = arith.constant 0 : i32
    %c0_i32_1 = arith.constant 0 : i32
    return %c0_i32, %c0_i32_0 : i32, i32
  }
  func.func @transform_2(%arg0: i32) -> (i32, i32) {
    %c0_i32 = arith.constant 0 : i32
    %c0_i32_0 = arith.constant 0 : i32
    %c0_i32_1 = arith.constant 0 : i32
    return %c0_i32, %c0_i32_0 : i32, i32
  }
  func.func @transform_3(%arg0: i32) -> (i32, i32) {
    %c0_i32 = arith.constant 0 : i32
    %c0_i32_0 = arith.constant 0 : i32
    %c0_i32_1 = arith.constant 0 : i32
    return %c0_i32, %c0_i32_0 : i32, i32
  }
  func.func @transform_4(%arg0: i32) -> (i32, i32) {
    %c0_i32 = arith.constant 0 : i32
    %c0_i32_0 = arith.constant 0 : i32
    %c0_i32_1 = arith.constant 0 : i32
    return %c0_i32, %c0_i32_0 : i32, i32
  }
  func.func @transform_5(%arg0: i32) -> (i32, i32) {
    %c0_i32 = arith.constant 0 : i32
    %c0_i32_0 = arith.constant 0 : i32
    %c0_i32_1 = arith.constant 0 : i32
    return %c0_i32, %c0_i32_0 : i32, i32
  }
  func.func @transform_6(%arg0: i32) -> (i32, i32) {
    %c0_i32 = arith.constant 0 : i32
    %c0_i32_0 = arith.constant 0 : i32
    %c0_i32_1 = arith.constant 0 : i32
    return %c0_i32, %c0_i32_0 : i32, i32
  }
  func.func @transform_7(%arg0: i32) -> (i32, i32) {
    %c0_i32 = arith.constant 0 : i32
    %c0_i32_0 = arith.constant 0 : i32
    return %arg0, %c0_i32 : i32, i32
  }
}

</mosaic_0001>

<llo_original>
// kernel: dqnet_forward.3
$region0: #{dqnet_forward.3}
  #allocation0 [shape = 'u32[]', space=smem, size = 0x4, offset = 0x4, fixed_abs, tag = 'smem constant byte address 0x4 - core index']
  #allocation1 [shape = 'u32[144,128]{1,0:T(1,128)}', space=vmem, size = 0x12000, scoped, tag = 'internal scratch']
  %s0 = inlined_call_operand.vmem [shape: bf16[128,256], index: 0, kind: input, shape index: {}]
  %s1 = inlined_call_operand.vmem [shape: bf16[256,128], index: 1, kind: input, shape index: {}]
  %s2 = inlined_call_operand.vmem [shape: f32[1,128], index: 2, kind: input, shape index: {}]
  %s3 = inlined_call_operand.vmem [shape: bf16[128,128], index: 3, kind: output, shape index: {}]
  %s4 = sld [smem:[#allocation0]]
  $region45: #{dqnet_forward.3} parent=0
    _
  %s6 = ssub.s32 1, %s4
  %s7 = scalar_select 0, %s6, %s4
  loop: start=0, step=1, limit=4
  $region2: #{dqnet_forward.3} parent=0 // loop_pre_header
    _
  $region3: #{dqnet_forward.3} parent=0 // loop_header
    %s9 = sphi 0, %s13
    %p10 = scmp.ge.s32.totalorder %s9, 4
    %s19 = sphi 0, %s21
    %s22 = sphi 0, %s19
    %s23 = sphi 0, %s22
    %s39 = sphi 0, %s23
    %s43 = sphi 0, %s43
    %s45 = sphi 0, %s43
    %s46 = sphi 0, %s45
    %s60 = sphi 0, %s46
    %s64 = sphi 0, %s64
    %s66 = sphi 0, %s64
    %s67 = sphi 0, %s66
    %s81 = sphi 0, %s67
    %s87 = sphi 0, %s89
    %s90 = sphi 0, %s87
    %s91 = sphi 0, %s90
    %s107 = sphi 0, %s91
  $region4: #{dqnet_forward.3} parent=0 // loop_header_branch
    %12 = sbr.rel (%p10) target = $region8
  $region5: #{dqnet_forward.3} parent=0 // loop_body
    %s14 = ssub.s32 %s9, 1
    %s15 = ssub.s32 %s9, 2
    %s16 = sadd.s32 %s9, 1
    %s17 = ssub.s32 %s9, %s16
    %p18 = scmp.eq.s32.totalorder %s17, 0
    %s20 = sadd.s32 %s19, 1
    %s21 = scalar_select %p18, %s19, %s20
    %p24 = pneg %p18
    %p25 = scmp.eq.s32.totalorder %s9, 1
    %p26 = por %p24, %p25
    %p27 = scmp.ne.s32.totalorder %s19, %s22
    %p28 = scmp.eq.s32.totalorder %s9, 0
    %p29 = por %p27, %p28
    %p30 = scmp.ne.s32.totalorder %s19, %s22
    %p31 = scmp.eq.s32.totalorder %s14, 1
    %p32 = por %p30, %p31
    %p33 = scmp.ne.s32.totalorder %s22, %s23
    %p34 = scmp.eq.s32.totalorder %s14, 0
    %p35 = por %p33, %p34
    %p36 = scmp.ne.s32.totalorder %s22, %s23
    %p37 = scmp.eq.s32.totalorder %s15, 1
    %p38 = por %p36, %p37
    %p40 = scmp.ne.s32.totalorder %s23, %s39
    %p41 = scmp.eq.s32.totalorder %s15, 0
    %p42 = por %p40, %p41
    %s44 = sadd.s32 %s43, 1
    %p47 = scmp.eq.s32.totalorder %s9, 1
    %p48 = scmp.ne.s32.totalorder %s43, %s45
    %p49 = scmp.eq.s32.totalorder %s9, 0
    %p50 = por %p48, %p49
    %p51 = scmp.ne.s32.totalorder %s43, %s45
    %p52 = scmp.eq.s32.totalorder %s14, 1
    %p53 = por %p51, %p52
    %p54 = scmp.ne.s32.totalorder %s45, %s46
    %p55 = scmp.eq.s32.totalorder %s14, 0
    %p56 = por %p54, %p55
    %p57 = scmp.ne.s32.totalorder %s45, %s46
    %p58 = scmp.eq.s32.totalorder %s15, 1
    %p59 = por %p57, %p58
    %p61 = scmp.ne.s32.totalorder %s46, %s60
    %p62 = scmp.eq.s32.totalorder %s15, 0
    %p63 = por %p61, %p62
    %s65 = sadd.s32 %s64, 1
    %p68 = scmp.eq.s32.totalorder %s9, 1
    %p69 = scmp.ne.s32.totalorder %s64, %s66
    %p70 = scmp.eq.s32.totalorder %s9, 0
    %p71 = por %p69, %p70
    %p72 = scmp.ne.s32.totalorder %s64, %s66
    %p73 = scmp.eq.s32.totalorder %s14, 1
    %p74 = por %p72, %p73
    %p75 = scmp.ne.s32.totalorder %s66, %s67
    %p76 = scmp.eq.s32.totalorder %s14, 0
    %p77 = por %p75, %p76
    %p78 = scmp.ne.s32.totalorder %s66, %s67
    %p79 = scmp.eq.s32.totalorder %s15, 1
    %p80 = por %p78, %p79
    %p82 = scmp.ne.s32.totalorder %s67, %s81
    %p83 = scmp.eq.s32.totalorder %s15, 0
    %p84 = por %p82, %p83
    %s85 = ssub.s32 %s9, %s16
    %p86 = scmp.eq.s32.totalorder %s85, 0
    %s88 = sadd.s32 %s87, 1
    %s89 = scalar_select %p86, %s87, %s88
    %p92 = pneg %p86
    %p93 = scmp.eq.s32.totalorder %s9, 1
    %p94 = por %p92, %p93
    %p95 = scmp.ne.s32.totalorder %s87, %s90
    %p96 = scmp.eq.s32.totalorder %s9, 0
    %p97 = por %p95, %p96
    %p98 = scmp.ne.s32.totalorder %s87, %s90
    %p99 = scmp.eq.s32.totalorder %s14, 1
    %p100 = por %p98, %p99
    %p101 = scmp.ne.s32.totalorder %s90, %s91
    %p102 = scmp.eq.s32.totalorder %s14, 0
    %p103 = por %p101, %p102
    %p104 = scmp.ne.s32.totalorder %s90, %s91
    %p105 = scmp.eq.s32.totalorder %s15, 1
    %p106 = por %p104, %p105
    %p108 = scmp.ne.s32.totalorder %s91, %s107
    %p109 = scmp.eq.s32.totalorder %s15, 0
    %p110 = por %p108, %p109
    %p111 = scmp.le.s32.totalorder 1, %s9
    %p112 = scmp.lt.s32.totalorder %s9, 3
    %p113 = pnand %p111, %p112
    %p114 = pneg %p113
    // Predicated region
    $region9: #{dqnet_forward.3} parent=5 // pred_check
      _
    $region10: #{dqnet_forward.3} parent=5 // pred_check_branch
      %116 = sbr.rel (%p113) target = $region12
    $region11: #{dqnet_forward.3} parent=5 // pred_region
      %s117 = ssub.s32 %s9, 1
      // Predicated region
      $region13: #{dqnet_forward.3} parent=11 // pred_check
        %p118 = pneg %p56
      $region14: #{dqnet_forward.3} parent=11 // pred_check_branch
        %120 = sbr.rel (%p118) target = $region16
      $region15: #{dqnet_forward.3} parent=11 // pred_region
        _
      $region16: #{dqnet_forward.3} parent=11 // pred_fallthru
        _
      // Predicated region
      $region17: #{dqnet_forward.3} parent=11 // pred_check
        %p121 = pneg %p77
      $region18: #{dqnet_forward.3} parent=11 // pred_check_branch
        %123 = sbr.rel (%p121) target = $region20
      $region19: #{dqnet_forward.3} parent=11 // pred_region
        _
      $region20: #{dqnet_forward.3} parent=11 // pred_fallthru
        _
    $region12: #{dqnet_forward.3} parent=5 // pred_fallthru
      _
    %p124 = scmp.lt.s32.totalorder %s9, 2
    // Predicated region
    $region21: #{dqnet_forward.3} parent=5 // pred_check
      %p125 = pneg %p124
    $region22: #{dqnet_forward.3} parent=5 // pred_check_branch
      %127 = sbr.rel (%p125) target = $region24
    $region23: #{dqnet_forward.3} parent=5 // pred_region
      // Predicated region
      $region25: #{dqnet_forward.3} parent=23 // pred_check
        %p128 = pneg %p29
      $region26: #{dqnet_forward.3} parent=23 // pred_check_branch
        %130 = sbr.rel (%p128) target = $region28
      $region27: #{dqnet_forward.3} parent=23 // pred_region
        %s131 = smul.u32 8, %s9
        %p132 = scmp.lt.s32.totalorder %s131, 15
        %s133 = scalar_select %p132, %s131, 15
        %s134 = smul.addr %s133, 2
        %s135 = smul.addr %s134, 4
        %s136 = scalar_lea.vmem %s0, %s135
        %s137 = smul.u32 8, %s9
      $region28: #{dqnet_forward.3} parent=23 // pred_fallthru
        _
    $region24: #{dqnet_forward.3} parent=5 // pred_fallthru
      _
    %p138 = scmp.le.s32.totalorder 1, %s9
    %p139 = scmp.lt.s32.totalorder %s9, 3
    %p140 = pnand %p138, %p139
    %p141 = pneg %p140
    // Predicated region
    $region29: #{dqnet_forward.3} parent=5 // pred_check
      _
    $region30: #{dqnet_forward.3} parent=5 // pred_check_branch
      %143 = sbr.rel (%p140) target = $region32
    $region31: #{dqnet_forward.3} parent=5 // pred_region
      %s144 = ssub.s32 %s9, 1
      %s145 = smul.u32 8, %s14
      %p146 = scmp.lt.s32.totalorder %s145, 15
      %s147 = scalar_select %p146, %s145, 15
      %s148 = smul.addr %s147, 2
      %s149 = smul.addr %s148, 4
      %s150 = scalar_lea.vmem %s0, %s149
      %p151 = pneg %p35
      %p152 = pneg %p32
      %p153 = pneg %p56
      %p154 = pneg %p53
      %p155 = pneg %p77
      %p156 = pneg %p74
      %p157 = pneg %p103
      %p158 = pneg %p100
      %s159 = smul.u32 8, %s14
      %p160 = scmp.lt.s32.totalorder %s159, 15
      %s161 = scalar_select %p160, %s159, 15
      %s162 = smul.addr %s161, 4
      %s163 = scalar_lea.vmem %s3, %s162
      %s164 = smul.u32 8, %s14
      %p165 = scmp.lt.s32.totalorder %s164, 15
      %s166 = scalar_select %p165, %s164, 15
      %s167 = smul.addr %s166, 2
      %s168 = smul.addr %s167, 4
      %s169 = scalar_lea.vmem %s0, %s168
      %s170 = smul.u32 8, %s14
      %s171 = smul.u32 8, %s14
      %p172 = scmp.lt.s32.totalorder %s171, 15
      %s173 = scalar_select %p172, %s171, 15
      %s174 = smul.addr %s173, 4
      %s175 = scalar_lea.vmem %s3, %s174
      %s176 = smul.u32 8, %s14
      %v178 = vld [vmem:[%s169] sm:$0xff]
      %v179 = vld [vmem:[%s169 + $0x8] sm:$0xff]
      %v180 = vld [vmem:[%s169 + $0x10] sm:$0xff]
      %v181 = vld [vmem:[%s169 + $0x18] sm:$0xff]
      %v182 = vld [vmem:[%s169 + $0x20] sm:$0xff]
      %v183 = vld [vmem:[%s169 + $0x28] sm:$0xff]
      %v184 = vld [vmem:[%s169 + $0x30] sm:$0xff]
      %v185 = vld [vmem:[%s169 + $0x38] sm:$0xff]
      %v186 = vld [vmem:[%s1] sm:$0xf]
      %v187 = vld [vmem:[%s1 + $0x4] sm:$0xf]
      %v188 = vld [vmem:[%s1 + $0x8] sm:$0xf]
      %v189 = vld [vmem:[%s1 + $0xc] sm:$0xf]
      %v190 = vld [vmem:[%s1 + $0x10] sm:$0xf]
      %v191 = vld [vmem:[%s1 + $0x14] sm:$0xf]
      %v192 = vld [vmem:[%s1 + $0x18] sm:$0xf]
      %v193 = vld [vmem:[%s1 + $0x1c] sm:$0xf]
      %v194 = vld [vmem:[%s1 + $0x20] sm:$0xf]
      %v195 = vld [vmem:[%s1 + $0x24] sm:$0xf]
      %v196 = vld [vmem:[%s1 + $0x28] sm:$0xf]
      %v197 = vld [vmem:[%s1 + $0x2c] sm:$0xf]
      %v198 = vld [vmem:[%s1 + $0x30] sm:$0xf]
      %v199 = vld [vmem:[%s1 + $0x34] sm:$0xf]
      %v200 = vld [vmem:[%s1 + $0x38] sm:$0xf]
      %v201 = vld [vmem:[%s1 + $0x3c] sm:$0xf]
      %v202 = vld [vmem:[%s1 + $0x40] sm:$0xf]
      %v203 = vld [vmem:[%s1 + $0x44] sm:$0xf]
      %v204 = vld [vmem:[%s1 + $0x48] sm:$0xf]
      %v205 = vld [vmem:[%s1 + $0x4c] sm:$0xf]
      %v206 = vld [vmem:[%s1 + $0x50] sm:$0xf]
      %v207 = vld [vmem:[%s1 + $0x54] sm:$0xf]
      %v208 = vld [vmem:[%s1 + $0x58] sm:$0xf]
      %v209 = vld [vmem:[%s1 + $0x5c] sm:$0xf]
      %v210 = vld [vmem:[%s1 + $0x60] sm:$0xf]
      %v211 = vld [vmem:[%s1 + $0x64] sm:$0xf]
      %v212 = vld [vmem:[%s1 + $0x68] sm:$0xf]
      %v213 = vld [vmem:[%s1 + $0x6c] sm:$0xf]
      %v214 = vld [vmem:[%s1 + $0x70] sm:$0xf]
      %v215 = vld [vmem:[%s1 + $0x74] sm:$0xf]
      %v216 = vld [vmem:[%s1 + $0x78] sm:$0xf]
      %v217 = vld [vmem:[%s1 + $0x7c] sm:$0xf]
      %v218 = vld [vmem:[%s2] sm:$0x1]
      %v220 = vlaneseq
      %v221 = vshrl.u32 %v220, 7
      %v222 = vsub.s32 0, %v221
      %v223 = vrot.slane %v218, %v222
      %v233 = vunpack.c.l.b16 %v178
      %v234 = vunpack.c.h.b16 %v178
      %v235 = vunpack.c.l.b16 %v179
      %v236 = vunpack.c.h.b16 %v179
      %v237 = vunpack.c.l.b16 %v180
      %v238 = vunpack.c.h.b16 %v180
      %v239 = vunpack.c.l.b16 %v181
      %v240 = vunpack.c.h.b16 %v181
      %v241 = vunpack.c.l.b16 %v182
      %v242 = vunpack.c.h.b16 %v182
      %v243 = vunpack.c.l.b16 %v183
      %v244 = vunpack.c.h.b16 %v183
      %v245 = vunpack.c.l.b16 %v184
      %v246 = vunpack.c.h.b16 %v184
      %v247 = vunpack.c.l.b16 %v185
      %v248 = vunpack.c.h.b16 %v185
      %v249 = vpack.c.b16 %v235, %v233
      %v250 = vpack.c.b16 %v236, %v234
      %v251 = vpack.c.b16 %v239, %v237
      %v252 = vpack.c.b16 %v240, %v238
      %v253 = vpack.c.b16 %v243, %v241
      %v254 = vpack.c.b16 %v244, %v242
      %v255 = vpack.c.b16 %v247, %v245
      %v256 = vpack.c.b16 %v248, %v246
      %v297 = vunpack.c.l.b16 %v186
      %v298 = vunpack.c.l.b16 %v187
      %v299 = vunpack.c.l.b16 %v188
      %v300 = vunpack.c.l.b16 %v189
      %v301 = vunpack.c.l.b16 %v190
      %v302 = vunpack.c.l.b16 %v191
      %v303 = vunpack.c.l.b16 %v192
      %v304 = vunpack.c.l.b16 %v193
      %v305 = vunpack.c.l.b16 %v194
      %v306 = vunpack.c.l.b16 %v195
      %v307 = vunpack.c.l.b16 %v196
      %v308 = vunpack.c.l.b16 %v197
      %v309 = vunpack.c.l.b16 %v198
      %v310 = vunpack.c.l.b16 %v199
      %v311 = vunpack.c.l.b16 %v200
      %v312 = vunpack.c.l.b16 %v201
      %v313 = vunpack.c.l.b16 %v202
      %v314 = vunpack.c.l.b16 %v203
      %v315 = vunpack.c.l.b16 %v204
      %v316 = vunpack.c.l.b16 %v205
      %v317 = vunpack.c.l.b16 %v206
      %v318 = vunpack.c.l.b16 %v207
      %v319 = vunpack.c.l.b16 %v208
      %v320 = vunpack.c.l.b16 %v209
      %v321 = vunpack.c.l.b16 %v210
      %v322 = vunpack.c.l.b16 %v211
      %v323 = vunpack.c.l.b16 %v212
      %v324 = vunpack.c.l.b16 %v213
      %v325 = vunpack.c.l.b16 %v214
      %v326 = vunpack.c.l.b16 %v215
      %v327 = vunpack.c.l.b16 %v216
      %v328 = vunpack.c.l.b16 %v217
      %v329 = vpack.c.b16 %v298, %v297
      %v330 = vpack.c.b16 %v300, %v299
      %v331 = vpack.c.b16 %v302, %v301
      %v332 = vpack.c.b16 %v304, %v303
      %v333 = vpack.c.b16 %v306, %v305
      %v334 = vpack.c.b16 %v308, %v307
      %v335 = vpack.c.b16 %v310, %v309
      %v336 = vpack.c.b16 %v312, %v311
      %v337 = vpack.c.b16 %v314, %v313
      %v338 = vpack.c.b16 %v316, %v315
      %v339 = vpack.c.b16 %v318, %v317
      %v340 = vpack.c.b16 %v320, %v319
      %v341 = vpack.c.b16 %v322, %v321
      %v342 = vpack.c.b16 %v324, %v323
      %v343 = vpack.c.b16 %v326, %v325
      %v344 = vpack.c.b16 %v328, %v327
      %361 = vmatprep.subr.bf16.mxu0 0
      %362 = vmatpush1.bf16.msra.mxu0 %v329
      %363 = vmatprep.subr.bf16.mxu0 0
      %364 = vmatpush1.bf16.msra.mxu0 %v330
      %365 = vmatprep.subr.bf16.mxu0 0
      %366 = vmatpush1.bf16.msra.mxu0 %v331
      %367 = vmatprep.subr.bf16.mxu0 0
      %368 = vmatpush1.bf16.msra.mxu0 %v332
      %369 = vmatprep.subr.bf16.mxu0 0
      %370 = vmatpush1.bf16.msra.mxu0 %v333
      %371 = vmatprep.subr.bf16.mxu0 0
      %372 = vmatpush1.bf16.msra.mxu0 %v334
      %373 = vmatprep.subr.bf16.mxu0 0
      %374 = vmatpush1.bf16.msra.mxu0 %v335
      %375 = vmatprep.subr.bf16.mxu0 0
      %376 = vmatpush1.bf16.msra.mxu0 %v336
      %377 = vmatprep.subr.bf16.mxu0 0
      %378 = vmatpush1.bf16.msra.mxu0 %v337
      %379 = vmatprep.subr.bf16.mxu0 0
      %380 = vmatpush1.bf16.msra.mxu0 %v338
      %381 = vmatprep.subr.bf16.mxu0 0
      %382 = vmatpush1.bf16.msra.mxu0 %v339
      %383 = vmatprep.subr.bf16.mxu0 0
      %384 = vmatpush1.bf16.msra.mxu0 %v340
      %385 = vmatprep.subr.bf16.mxu0 0
      %386 = vmatpush1.bf16.msra.mxu0 %v341
      %387 = vmatprep.subr.bf16.mxu0 0
      %388 = vmatpush1.bf16.msra.mxu0 %v342
      %389 = vmatprep.subr.bf16.mxu0 0
      %390 = vmatpush1.bf16.msra.mxu0 %v343
      %391 = vmatprep.subr.bf16.mxu0 0
      %392 = vmatpush1.bf16.msra.mxu0 %v344
      %393 = vmatprep.mubr.bf16.mxu0 %v250
      %394 = vmatmul.mubr.bf16.gmra.mrb[0].mxu0 %v249
      %v395 = vpop.f32.mrb[0].mxu0
      %v396 = vadd.f32 %v223, %v395
      %v397 = vpop.f32.mrb[0].mxu0
      %v398 = vpop.f32.mrb[0].mxu0
      %v399 = vadd.f32 %v223, %v398
      %v400 = vpop.f32.mrb[0].mxu0
      %401 = vmatprep.mubr.bf16.mxu0 %v252
      %402 = vmatmul.mubr.bf16.gmra.mrb[0].mxu0 %v251
      %v403 = vpop.f32.mrb[0].mxu0
      %v404 = vadd.f32 %v223, %v403
      %v405 = vpop.f32.mrb[0].mxu0
      %v406 = vpop.f32.mrb[0].mxu0
      %v407 = vadd.f32 %v223, %v406
      %v408 = vpop.f32.mrb[0].mxu0
      %409 = vmatprep.mubr.bf16.mxu0 %v254
      %410 = vmatmul.mubr.bf16.gmra.mrb[0].mxu0 %v253
      %v411 = vpop.f32.mrb[0].mxu0
      %v412 = vadd.f32 %v223, %v411
      %v413 = vpop.f32.mrb[0].mxu0
      %v414 = vpop.f32.mrb[0].mxu0
      %v415 = vadd.f32 %v223, %v414
      %v416 = vpop.f32.mrb[0].mxu0
      %417 = vmatprep.mubr.bf16.mxu0 %v256
      %418 = vmatmul.mubr.bf16.gmra.mrb[0].mxu0 %v255
      %v419 = vpop.f32.mrb[0].mxu0
      %v420 = vadd.f32 %v223, %v419
      %v421 = vpop.f32.mrb[0].mxu0
      %v422 = vpop.f32.mrb[0].mxu0
      %v423 = vadd.f32 %v223, %v422
      %v424 = vpop.f32.mrb[0].mxu0
      %425 = vdwg.mxu0
      %v426 = vmax.f32 %v396, 0.0
      %v427 = vmax.f32 %v399, 0.0
      %v428 = vmax.f32 %v404, 0.0
      %v429 = vmax.f32 %v407, 0.0
      %v430 = vmax.f32 %v412, 0.0
      %v431 = vmax.f32 %v415, 0.0
      %v432 = vmax.f32 %v420, 0.0
      %v433 = vmax.f32 %v423, 0.0
      %v434 = vpack.c.bf16 %v427, %v426
      %v435 = vpack.c.bf16 %v429, %v428
      %v436 = vpack.c.bf16 %v431, %v430
      %v437 = vpack.c.bf16 %v433, %v432
      %v442 = vunpack.c.l.b16 %v434
      %v443 = vunpack.c.h.b16 %v434
      %v444 = vunpack.c.l.b16 %v435
      %v445 = vunpack.c.h.b16 %v435
      %v446 = vunpack.c.l.b16 %v436
      %v447 = vunpack.c.h.b16 %v436
      %v448 = vunpack.c.l.b16 %v437
      %v449 = vunpack.c.h.b16 %v437
      %v450 = vpack.c.b16 %v442, %v442
      %v451 = vpack.c.b16 %v443, %v443
      %v452 = vpack.c.b16 %v444, %v444
      %v453 = vpack.c.b16 %v445, %v445
      %v454 = vpack.c.b16 %v446, %v446
      %v455 = vpack.c.b16 %v447, %v447
      %v456 = vpack.c.b16 %v448, %v448
      %v457 = vpack.c.b16 %v449, %v449
      %466 = vst [vmem:[%s175] sm:$0xf] %v450
      %467 = vst [vmem:[%s175 + $0x4] sm:$0xf] %v451
      %468 = vst [vmem:[%s175 + $0x8] sm:$0xf] %v452
      %469 = vst [vmem:[%s175 + $0xc] sm:$0xf] %v453
      %470 = vst [vmem:[%s175 + $0x10] sm:$0xf] %v454
      %471 = vst [vmem:[%s175 + $0x14] sm:$0xf] %v455
      %472 = vst [vmem:[%s175 + $0x18] sm:$0xf] %v456
      %473 = vst [vmem:[%s175 + $0x1c] sm:$0xf] %v457
      %s474 = smul.u32 8, %s14
      %p475 = scmp.lt.s32.totalorder %s474, 15
      %s476 = scalar_select %p475, %s474, 15
      %s477 = smul.addr %s476, 4
      %s478 = scalar_lea.vmem %s3, %s477
      // Predicated region
      $region33: #{dqnet_forward.3} parent=31 // pred_check
        %p479 = pneg %p100
      $region34: #{dqnet_forward.3} parent=31 // pred_check_branch
        %481 = sbr.rel (%p479) target = $region36
      $region35: #{dqnet_forward.3} parent=31 // pred_region
        %s482 = smul.u32 8, %s14
      $region36: #{dqnet_forward.3} parent=31 // pred_fallthru
        _
    $region32: #{dqnet_forward.3} parent=5 // pred_fallthru
      _
    %p483 = scmp.le.s32.totalorder 2, %s9
    // Predicated region
    $region37: #{dqnet_forward.3} parent=5 // pred_check
      %p484 = pneg %p483
    $region38: #{dqnet_forward.3} parent=5 // pred_check_branch
      %486 = sbr.rel (%p484) target = $region40
    $region39: #{dqnet_forward.3} parent=5 // pred_region
      %s487 = ssub.s32 %s9, 2
      // Predicated region
      $region41: #{dqnet_forward.3} parent=39 // pred_check
        %p488 = pneg %p106
      $region42: #{dqnet_forward.3} parent=39 // pred_check_branch
        %490 = sbr.rel (%p488) target = $region44
      $region43: #{dqnet_forward.3} parent=39 // pred_region
        %s491 = smul.u32 8, %s15
        %p492 = scmp.lt.s32.totalorder %s491, 15
        %s493 = scalar_select %p492, %s491, 15
        %s494 = smul.addr %s493, 4
        %s495 = scalar_lea.vmem %s3, %s494
      $region44: #{dqnet_forward.3} parent=39 // pred_fallthru
        _
    $region40: #{dqnet_forward.3} parent=5 // pred_fallthru
      _
  $region6: #{dqnet_forward.3} parent=0 // loop_footer
    %s13 = sadd.s32 1, %s9
  $region7: #{dqnet_forward.3} parent=0 // loop_footer_branch
    %8 = sbr.rel target = $region3
  $region8: #{dqnet_forward.3} parent=0 // loop_exit
    _

// kernel: dqnet_forward.4
$region0: #{dqnet_forward.4}
  #allocation0 [shape = 'u32[]', space=smem, size = 0x4, offset = 0x4, fixed_abs, tag = 'smem constant byte address 0x4 - core index']
  #allocation1 [shape = 'u32[144,128]{1,0:T(1,128)}', space=vmem, size = 0x12000, scoped, tag = 'internal scratch']
  %s0 = inlined_call_operand.vmem [shape: bf16[32,512], index: 0, kind: input, shape index: {}]
  %s1 = inlined_call_operand.vmem [shape: bf16[512,128], index: 1, kind: input, shape index: {}]
  %s2 = inlined_call_operand.vmem [shape: f32[1,128], index: 2, kind: input, shape index: {}]
  %s3 = inlined_call_operand.vmem [shape: bf16[32,128], index: 3, kind: output, shape index: {}]
  %s4 = sld [smem:[#allocation0]]
  $region45: #{dqnet_forward.4} parent=0
    _
  %s6 = ssub.s32 1, %s4
  %s7 = scalar_select 0, %s6, %s4
  loop: start=0, step=1, limit=4
  $region2: #{dqnet_forward.4} parent=0 // loop_pre_header
    _
  $region3: #{dqnet_forward.4} parent=0 // loop_header
    %s9 = sphi 0, %s13
    %p10 = scmp.ge.s32.totalorder %s9, 4
    %s19 = sphi 0, %s21
    %s22 = sphi 0, %s19
    %s23 = sphi 0, %s22
    %s39 = sphi 0, %s23
    %s43 = sphi 0, %s43
    %s45 = sphi 0, %s43
    %s46 = sphi 0, %s45
    %s60 = sphi 0, %s46
    %s64 = sphi 0, %s64
    %s66 = sphi 0, %s64
    %s67 = sphi 0, %s66
    %s81 = sphi 0, %s67
    %s87 = sphi 0, %s89
    %s90 = sphi 0, %s87
    %s91 = sphi 0, %s90
    %s107 = sphi 0, %s91
  $region4: #{dqnet_forward.4} parent=0 // loop_header_branch
    %12 = sbr.rel (%p10) target = $region8
  $region5: #{dqnet_forward.4} parent=0 // loop_body
    %s14 = ssub.s32 %s9, 1
    %s15 = ssub.s32 %s9, 2
    %s16 = sadd.s32 %s9, 1
    %s17 = ssub.s32 %s9, %s16
    %p18 = scmp.eq.s32.totalorder %s17, 0
    %s20 = sadd.s32 %s19, 1
    %s21 = scalar_select %p18, %s19, %s20
    %p24 = pneg %p18
    %p25 = scmp.eq.s32.totalorder %s9, 1
    %p26 = por %p24, %p25
    %p27 = scmp.ne.s32.totalorder %s19, %s22
    %p28 = scmp.eq.s32.totalorder %s9, 0
    %p29 = por %p27, %p28
    %p30 = scmp.ne.s32.totalorder %s19, %s22
    %p31 = scmp.eq.s32.totalorder %s14, 1
    %p32 = por %p30, %p31
    %p33 = scmp.ne.s32.totalorder %s22, %s23
    %p34 = scmp.eq.s32.totalorder %s14, 0
    %p35 = por %p33, %p34
    %p36 = scmp.ne.s32.totalorder %s22, %s23
    %p37 = scmp.eq.s32.totalorder %s15, 1
    %p38 = por %p36, %p37
    %p40 = scmp.ne.s32.totalorder %s23, %s39
    %p41 = scmp.eq.s32.totalorder %s15, 0
    %p42 = por %p40, %p41
    %s44 = sadd.s32 %s43, 1
    %p47 = scmp.eq.s32.totalorder %s9, 1
    %p48 = scmp.ne.s32.totalorder %s43, %s45
    %p49 = scmp.eq.s32.totalorder %s9, 0
    %p50 = por %p48, %p49
    %p51 = scmp.ne.s32.totalorder %s43, %s45
    %p52 = scmp.eq.s32.totalorder %s14, 1
    %p53 = por %p51, %p52
    %p54 = scmp.ne.s32.totalorder %s45, %s46
    %p55 = scmp.eq.s32.totalorder %s14, 0
    %p56 = por %p54, %p55
    %p57 = scmp.ne.s32.totalorder %s45, %s46
    %p58 = scmp.eq.s32.totalorder %s15, 1
    %p59 = por %p57, %p58
    %p61 = scmp.ne.s32.totalorder %s46, %s60
    %p62 = scmp.eq.s32.totalorder %s15, 0
    %p63 = por %p61, %p62
    %s65 = sadd.s32 %s64, 1
    %p68 = scmp.eq.s32.totalorder %s9, 1
    %p69 = scmp.ne.s32.totalorder %s64, %s66
    %p70 = scmp.eq.s32.totalorder %s9, 0
    %p71 = por %p69, %p70
    %p72 = scmp.ne.s32.totalorder %s64, %s66
    %p73 = scmp.eq.s32.totalorder %s14, 1
    %p74 = por %p72, %p73
    %p75 = scmp.ne.s32.totalorder %s66, %s67
    %p76 = scmp.eq.s32.totalorder %s14, 0
    %p77 = por %p75, %p76
    %p78 = scmp.ne.s32.totalorder %s66, %s67
    %p79 = scmp.eq.s32.totalorder %s15, 1
    %p80 = por %p78, %p79
    %p82 = scmp.ne.s32.totalorder %s67, %s81
    %p83 = scmp.eq.s32.totalorder %s15, 0
    %p84 = por %p82, %p83
    %s85 = ssub.s32 %s9, %s16
    %p86 = scmp.eq.s32.totalorder %s85, 0
    %s88 = sadd.s32 %s87, 1
    %s89 = scalar_select %p86, %s87, %s88
    %p92 = pneg %p86
    %p93 = scmp.eq.s32.totalorder %s9, 1
    %p94 = por %p92, %p93
    %p95 = scmp.ne.s32.totalorder %s87, %s90
    %p96 = scmp.eq.s32.totalorder %s9, 0
    %p97 = por %p95, %p96
    %p98 = scmp.ne.s32.totalorder %s87, %s90
    %p99 = scmp.eq.s32.totalorder %s14, 1
    %p100 = por %p98, %p99
    %p101 = scmp.ne.s32.totalorder %s90, %s91
    %p102 = scmp.eq.s32.totalorder %s14, 0
    %p103 = por %p101, %p102
    %p104 = scmp.ne.s32.totalorder %s90, %s91
    %p105 = scmp.eq.s32.totalorder %s15, 1
    %p106 = por %p104, %p105
    %p108 = scmp.ne.s32.totalorder %s91, %s107
    %p109 = scmp.eq.s32.totalorder %s15, 0
    %p110 = por %p108, %p109
    %p111 = scmp.le.s32.totalorder 1, %s9
    %p112 = scmp.lt.s32.totalorder %s9, 3
    %p113 = pnand %p111, %p112
    %p114 = pneg %p113
    // Predicated region
    $region9: #{dqnet_forward.4} parent=5 // pred_check
      _
    $region10: #{dqnet_forward.4} parent=5 // pred_check_branch
      %116 = sbr.rel (%p113) target = $region12
    $region11: #{dqnet_forward.4} parent=5 // pred_region
      %s117 = ssub.s32 %s9, 1
      // Predicated region
      $region13: #{dqnet_forward.4} parent=11 // pred_check
        %p118 = pneg %p56
      $region14: #{dqnet_forward.4} parent=11 // pred_check_branch
        %120 = sbr.rel (%p118) target = $region16
      $region15: #{dqnet_forward.4} parent=11 // pred_region
        _
      $region16: #{dqnet_forward.4} parent=11 // pred_fallthru
        _
      // Predicated region
      $region17: #{dqnet_forward.4} parent=11 // pred_check
        %p121 = pneg %p77
      $region18: #{dqnet_forward.4} parent=11 // pred_check_branch
        %123 = sbr.rel (%p121) target = $region20
      $region19: #{dqnet_forward.4} parent=11 // pred_region
        _
      $region20: #{dqnet_forward.4} parent=11 // pred_fallthru
        _
    $region12: #{dqnet_forward.4} parent=5 // pred_fallthru
      _
    %p124 = scmp.lt.s32.totalorder %s9, 2
    // Predicated region
    $region21: #{dqnet_forward.4} parent=5 // pred_check
      %p125 = pneg %p124
    $region22: #{dqnet_forward.4} parent=5 // pred_check_branch
      %127 = sbr.rel (%p125) target = $region24
    $region23: #{dqnet_forward.4} parent=5 // pred_region
      // Predicated region
      $region25: #{dqnet_forward.4} parent=23 // pred_check
        %p128 = pneg %p29
      $region26: #{dqnet_forward.4} parent=23 // pred_check_branch
        %130 = sbr.rel (%p128) target = $region28
      $region27: #{dqnet_forward.4} parent=23 // pred_region
        %s131 = smul.u32 2, %s9
        %p132 = scmp.lt.s32.totalorder %s131, 3
        %s133 = scalar_select %p132, %s131, 3
        %s134 = smul.addr %s133, 4
        %s135 = smul.addr %s134, 4
        %s136 = scalar_lea.vmem %s0, %s135
        %s137 = smul.u32 2, %s9
      $region28: #{dqnet_forward.4} parent=23 // pred_fallthru
        _
    $region24: #{dqnet_forward.4} parent=5 // pred_fallthru
      _
    %p138 = scmp.le.s32.totalorder 1, %s9
    %p139 = scmp.lt.s32.totalorder %s9, 3
    %p140 = pnand %p138, %p139
    %p141 = pneg %p140
    // Predicated region
    $region29: #{dqnet_forward.4} parent=5 // pred_check
      _
    $region30: #{dqnet_forward.4} parent=5 // pred_check_branch
      %143 = sbr.rel (%p140) target = $region32
    $region31: #{dqnet_forward.4} parent=5 // pred_region
      %s144 = ssub.s32 %s9, 1
      %s145 = smul.u32 2, %s14
      %p146 = scmp.lt.s32.totalorder %s145, 3
      %s147 = scalar_select %p146, %s145, 3
      %s148 = smul.addr %s147, 4
      %s149 = smul.addr %s148, 4
      %s150 = scalar_lea.vmem %s0, %s149
      %p151 = pneg %p35
      %p152 = pneg %p32
      %p153 = pneg %p56
      %p154 = pneg %p53
      %p155 = pneg %p77
      %p156 = pneg %p74
      %p157 = pneg %p103
      %p158 = pneg %p100
      %s159 = smul.u32 2, %s14
      %p160 = scmp.lt.s32.totalorder %s159, 3
      %s161 = scalar_select %p160, %s159, 3
      %s162 = smul.addr %s161, 4
      %s163 = scalar_lea.vmem %s3, %s162
      %s164 = smul.u32 2, %s14
      %p165 = scmp.lt.s32.totalorder %s164, 3
      %s166 = scalar_select %p165, %s164, 3
      %s167 = smul.addr %s166, 4
      %s168 = smul.addr %s167, 4
      %s169 = scalar_lea.vmem %s0, %s168
      %s170 = smul.u32 2, %s14
      %s171 = smul.u32 2, %s14
      %p172 = scmp.lt.s32.totalorder %s171, 3
      %s173 = scalar_select %p172, %s171, 3
      %s174 = smul.addr %s173, 4
      %s175 = scalar_lea.vmem %s3, %s174
      %s176 = smul.u32 2, %s14
      %v178 = vld [vmem:[%s169] sm:$0xff]
      %v179 = vld [vmem:[%s169 + $0x8] sm:$0xff]
      %v180 = vld [vmem:[%s169 + $0x10] sm:$0xff]
      %v181 = vld [vmem:[%s169 + $0x18] sm:$0xff]
      %v182 = vld [vmem:[%s1] sm:$0xf]
      %v183 = vld [vmem:[%s1 + $0x4] sm:$0xf]
      %v184 = vld [vmem:[%s1 + $0x8] sm:$0xf]
      %v185 = vld [vmem:[%s1 + $0xc] sm:$0xf]
      %v186 = vld [vmem:[%s1 + $0x10] sm:$0xf]
      %v187 = vld [vmem:[%s1 + $0x14] sm:$0xf]
      %v188 = vld [vmem:[%s1 + $0x18] sm:$0xf]
      %v189 = vld [vmem:[%s1 + $0x1c] sm:$0xf]
      %v190 = vld [vmem:[%s1 + $0x20] sm:$0xf]
      %v191 = vld [vmem:[%s1 + $0x24] sm:$0xf]
      %v192 = vld [vmem:[%s1 + $0x28] sm:$0xf]
      %v193 = vld [vmem:[%s1 + $0x2c] sm:$0xf]
      %v194 = vld [vmem:[%s1 + $0x30] sm:$0xf]
      %v195 = vld [vmem:[%s1 + $0x34] sm:$0xf]
      %v196 = vld [vmem:[%s1 + $0x38] sm:$0xf]
      %v197 = vld [vmem:[%s1 + $0x3c] sm:$0xf]
      %v198 = vld [vmem:[%s1 + $0x40] sm:$0xf]
      %v199 = vld [vmem:[%s1 + $0x44] sm:$0xf]
      %v200 = vld [vmem:[%s1 + $0x48] sm:$0xf]
      %v201 = vld [vmem:[%s1 + $0x4c] sm:$0xf]
      %v202 = vld [vmem:[%s1 + $0x50] sm:$0xf]
      %v203 = vld [vmem:[%s1 + $0x54] sm:$0xf]
      %v204 = vld [vmem:[%s1 + $0x58] sm:$0xf]
      %v205 = vld [vmem:[%s1 + $0x5c] sm:$0xf]
      %v206 = vld [vmem:[%s1 + $0x60] sm:$0xf]
      %v207 = vld [vmem:[%s1 + $0x64] sm:$0xf]
      %v208 = vld [vmem:[%s1 + $0x68] sm:$0xf]
      %v209 = vld [vmem:[%s1 + $0x6c] sm:$0xf]
      %v210 = vld [vmem:[%s1 + $0x70] sm:$0xf]
      %v211 = vld [vmem:[%s1 + $0x74] sm:$0xf]
      %v212 = vld [vmem:[%s1 + $0x78] sm:$0xf]
      %v213 = vld [vmem:[%s1 + $0x7c] sm:$0xf]
      %v214 = vld [vmem:[%s1 + $0x80] sm:$0xf]
      %v215 = vld [vmem:[%s1 + $0x84] sm:$0xf]
      %v216 = vld [vmem:[%s1 + $0x88] sm:$0xf]
      %v217 = vld [vmem:[%s1 + $0x8c] sm:$0xf]
      %v218 = vld [vmem:[%s1 + $0x90] sm:$0xf]
      %v219 = vld [vmem:[%s1 + $0x94] sm:$0xf]
      %v220 = vld [vmem:[%s1 + $0x98] sm:$0xf]
      %v221 = vld [vmem:[%s1 + $0x9c] sm:$0xf]
      %v222 = vld [vmem:[%s1 + $0xa0] sm:$0xf]
      %v223 = vld [vmem:[%s1 + $0xa4] sm:$0xf]
      %v224 = vld [vmem:[%s1 + $0xa8] sm:$0xf]
      %v225 = vld [vmem:[%s1 + $0xac] sm:$0xf]
      %v226 = vld [vmem:[%s1 + $0xb0] sm:$0xf]
      %v227 = vld [vmem:[%s1 + $0xb4] sm:$0xf]
      %v228 = vld [vmem:[%s1 + $0xb8] sm:$0xf]
      %v229 = vld [vmem:[%s1 + $0xbc] sm:$0xf]
      %v230 = vld [vmem:[%s1 + $0xc0] sm:$0xf]
      %v231 = vld [vmem:[%s1 + $0xc4] sm:$0xf]
      %v232 = vld [vmem:[%s1 + $0xc8] sm:$0xf]
      %v233 = vld [vmem:[%s1 + $0xcc] sm:$0xf]
      %v234 = vld [vmem:[%s1 + $0xd0] sm:$0xf]
      %v235 = vld [vmem:[%s1 + $0xd4] sm:$0xf]
      %v236 = vld [vmem:[%s1 + $0xd8] sm:$0xf]
      %v237 = vld [vmem:[%s1 + $0xdc] sm:$0xf]
      %v238 = vld [vmem:[%s1 + $0xe0] sm:$0xf]
      %v239 = vld [vmem:[%s1 + $0xe4] sm:$0xf]
      %v240 = vld [vmem:[%s1 + $0xe8] sm:$0xf]
      %v241 = vld [vmem:[%s1 + $0xec] sm:$0xf]
      %v242 = vld [vmem:[%s1 + $0xf0] sm:$0xf]
      %v243 = vld [vmem:[%s1 + $0xf4] sm:$0xf]
      %v244 = vld [vmem:[%s1 + $0xf8] sm:$0xf]
      %v245 = vld [vmem:[%s1 + $0xfc] sm:$0xf]
      %v246 = vld [vmem:[%s2] sm:$0x1]
      %v248 = vlaneseq
      %v249 = vshrl.u32 %v248, 7
      %v250 = vsub.s32 0, %v249
      %v251 = vrot.slane %v246, %v250
      %v257 = vunpack.c.l.b16 %v178
      %v258 = vunpack.c.h.b16 %v178
      %v259 = vunpack.c.l.b16 %v179
      %v260 = vunpack.c.h.b16 %v179
      %v261 = vunpack.c.l.b16 %v180
      %v262 = vunpack.c.h.b16 %v180
      %v263 = vunpack.c.l.b16 %v181
      %v264 = vunpack.c.h.b16 %v181
      %v265 = vpack.c.b16 %v261, %v257
      %v266 = vpack.c.b16 %v262, %v258
      %v267 = vpack.c.b16 %v263, %v259
      %v268 = vpack.c.b16 %v264, %v260
      %v337 = vunpack.c.l.b16 %v182
      %v338 = vunpack.c.l.b16 %v183
      %v339 = vunpack.c.l.b16 %v184
      %v340 = vunpack.c.l.b16 %v185
      %v341 = vunpack.c.l.b16 %v186
      %v342 = vunpack.c.l.b16 %v187
      %v343 = vunpack.c.l.b16 %v188
      %v344 = vunpack.c.l.b16 %v189
      %v345 = vunpack.c.l.b16 %v190
      %v346 = vunpack.c.l.b16 %v191
      %v347 = vunpack.c.l.b16 %v192
      %v348 = vunpack.c.l.b16 %v193
      %v349 = vunpack.c.l.b16 %v194
      %v350 = vunpack.c.l.b16 %v195
      %v351 = vunpack.c.l.b16 %v196
      %v352 = vunpack.c.l.b16 %v197
      %v353 = vunpack.c.l.b16 %v198
      %v354 = vunpack.c.l.b16 %v199
      %v355 = vunpack.c.l.b16 %v200
      %v356 = vunpack.c.l.b16 %v201
      %v357 = vunpack.c.l.b16 %v202
      %v358 = vunpack.c.l.b16 %v203
      %v359 = vunpack.c.l.b16 %v204
      %v360 = vunpack.c.l.b16 %v205
      %v361 = vunpack.c.l.b16 %v206
      %v362 = vunpack.c.l.b16 %v207
      %v363 = vunpack.c.l.b16 %v208
      %v364 = vunpack.c.l.b16 %v209
      %v365 = vunpack.c.l.b16 %v210
      %v366 = vunpack.c.l.b16 %v211
      %v367 = vunpack.c.l.b16 %v212
      %v368 = vunpack.c.l.b16 %v213
      %v369 = vunpack.c.l.b16 %v214
      %v370 = vunpack.c.l.b16 %v215
      %v371 = vunpack.c.l.b16 %v216
      %v372 = vunpack.c.l.b16 %v217
      %v373 = vunpack.c.l.b16 %v218
      %v374 = vunpack.c.l.b16 %v219
      %v375 = vunpack.c.l.b16 %v220
      %v376 = vunpack.c.l.b16 %v221
      %v377 = vunpack.c.l.b16 %v222
      %v378 = vunpack.c.l.b16 %v223
      %v379 = vunpack.c.l.b16 %v224
      %v380 = vunpack.c.l.b16 %v225
      %v381 = vunpack.c.l.b16 %v226
      %v382 = vunpack.c.l.b16 %v227
      %v383 = vunpack.c.l.b16 %v228
      %v384 = vunpack.c.l.b16 %v229
      %v385 = vunpack.c.l.b16 %v230
      %v386 = vunpack.c.l.b16 %v231
      %v387 = vunpack.c.l.b16 %v232
      %v388 = vunpack.c.l.b16 %v233
      %v389 = vunpack.c.l.b16 %v234
      %v390 = vunpack.c.l.b16 %v235
      %v391 = vunpack.c.l.b16 %v236
      %v392 = vunpack.c.l.b16 %v237
      %v393 = vunpack.c.l.b16 %v238
      %v394 = vunpack.c.l.b16 %v239
      %v395 = vunpack.c.l.b16 %v240
      %v396 = vunpack.c.l.b16 %v241
      %v397 = vunpack.c.l.b16 %v242
      %v398 = vunpack.c.l.b16 %v243
      %v399 = vunpack.c.l.b16 %v244
      %v400 = vunpack.c.l.b16 %v245
      %v401 = vpack.c.b16 %v338, %v337
      %v402 = vpack.c.b16 %v340, %v339
      %v403 = vpack.c.b16 %v342, %v341
      %v404 = vpack.c.b16 %v344, %v343
      %v405 = vpack.c.b16 %v346, %v345
      %v406 = vpack.c.b16 %v348, %v347
      %v407 = vpack.c.b16 %v350, %v349
      %v408 = vpack.c.b16 %v352, %v351
      %v409 = vpack.c.b16 %v354, %v353
      %v410 = vpack.c.b16 %v356, %v355
      %v411 = vpack.c.b16 %v358, %v357
      %v412 = vpack.c.b16 %v360, %v359
      %v413 = vpack.c.b16 %v362, %v361
      %v414 = vpack.c.b16 %v364, %v363
      %v415 = vpack.c.b16 %v366, %v365
      %v416 = vpack.c.b16 %v368, %v367
      %v417 = vpack.c.b16 %v370, %v369
      %v418 = vpack.c.b16 %v372, %v371
      %v419 = vpack.c.b16 %v374, %v373
      %v420 = vpack.c.b16 %v376, %v375
      %v421 = vpack.c.b16 %v378, %v377
      %v422 = vpack.c.b16 %v380, %v379
      %v423 = vpack.c.b16 %v382, %v381
      %v424 = vpack.c.b16 %v384, %v383
      %v425 = vpack.c.b16 %v386, %v385
      %v426 = vpack.c.b16 %v388, %v387
      %v427 = vpack.c.b16 %v390, %v389
      %v428 = vpack.c.b16 %v392, %v391
      %v429 = vpack.c.b16 %v394, %v393
      %v430 = vpack.c.b16 %v396, %v395
      %v431 = vpack.c.b16 %v398, %v397
      %v432 = vpack.c.b16 %v400, %v399
      %465 = vmatprep.subr.bf16.mxu0 0
      %466 = vmatpush1.bf16.msra.mxu0 %v401
      %467 = vmatprep.subr.bf16.mxu0 0
      %468 = vmatpush1.bf16.msra.mxu0 %v402
      %469 = vmatprep.subr.bf16.mxu0 0
      %470 = vmatpush1.bf16.msra.mxu0 %v403
      %471 = vmatprep.subr.bf16.mxu0 0
      %472 = vmatpush1.bf16.msra.mxu0 %v404
      %473 = vmatprep.subr.bf16.mxu0 0
      %474 = vmatpush1.bf16.msra.mxu0 %v405
      %475 = vmatprep.subr.bf16.mxu0 0
      %476 = vmatpush1.bf16.msra.mxu0 %v406
      %477 = vmatprep.subr.bf16.mxu0 0
      %478 = vmatpush1.bf16.msra.mxu0 %v407
      %479 = vmatprep.subr.bf16.mxu0 0
      %480 = vmatpush1.bf16.msra.mxu0 %v408
      %481 = vmatprep.subr.bf16.mxu0 0
      %482 = vmatpush1.bf16.msra.mxu0 %v409
      %483 = vmatprep.subr.bf16.mxu0 0
      %484 = vmatpush1.bf16.msra.mxu0 %v410
      %485 = vmatprep.subr.bf16.mxu0 0
      %486 = vmatpush1.bf16.msra.mxu0 %v411
      %487 = vmatprep.subr.bf16.mxu0 0
      %488 = vmatpush1.bf16.msra.mxu0 %v412
      %489 = vmatprep.subr.bf16.mxu0 0
      %490 = vmatpush1.bf16.msra.mxu0 %v413
      %491 = vmatprep.subr.bf16.mxu0 0
      %492 = vmatpush1.bf16.msra.mxu0 %v414
      %493 = vmatprep.subr.bf16.mxu0 0
      %494 = vmatpush1.bf16.msra.mxu0 %v415
      %495 = vmatprep.subr.bf16.mxu0 0
      %496 = vmatpush1.bf16.msra.mxu0 %v416
      %497 = vmatprep.mubr.bf16.mxu0 %v266
      %498 = vmatmul.mubr.bf16.gmra.mrb[0].mxu0 %v265
      %v499 = vpop.f32.mrb[0].mxu0
      %v500 = vadd.f32 %v251, %v499
      %v501 = vpop.f32.mrb[0].mxu0
      %v502 = vpop.f32.mrb[0].mxu0
      %v503 = vadd.f32 %v251, %v502
      %v504 = vpop.f32.mrb[0].mxu0
      %505 = vdwg.mxu0
      %506 = vmatprep.subr.bf16.mxu0 0
      %507 = vmatpush1.bf16.msra.mxu0 %v417
      %508 = vmatprep.subr.bf16.mxu0 0
      %509 = vmatpush1.bf16.msra.mxu0 %v418
      %510 = vmatprep.subr.bf16.mxu0 0
      %511 = vmatpush1.bf16.msra.mxu0 %v419
      %512 = vmatprep.subr.bf16.mxu0 0
      %513 = vmatpush1.bf16.msra.mxu0 %v420
      %514 = vmatprep.subr.bf16.mxu0 0
      %515 = vmatpush1.bf16.msra.mxu0 %v421
      %516 = vmatprep.subr.bf16.mxu0 0
      %517 = vmatpush1.bf16.msra.mxu0 %v422
      %518 = vmatprep.subr.bf16.mxu0 0
      %519 = vmatpush1.bf16.msra.mxu0 %v423
      %520 = vmatprep.subr.bf16.mxu0 0
      %521 = vmatpush1.bf16.msra.mxu0 %v424
      %522 = vmatprep.subr.bf16.mxu0 0
      %523 = vmatpush1.bf16.msra.mxu0 %v425
      %524 = vmatprep.subr.bf16.mxu0 0
      %525 = vmatpush1.bf16.msra.mxu0 %v426
      %526 = vmatprep.subr.bf16.mxu0 0
      %527 = vmatpush1.bf16.msra.mxu0 %v427
      %528 = vmatprep.subr.bf16.mxu0 0
      %529 = vmatpush1.bf16.msra.mxu0 %v428
      %530 = vmatprep.subr.bf16.mxu0 0
      %531 = vmatpush1.bf16.msra.mxu0 %v429
      %532 = vmatprep.subr.bf16.mxu0 0
      %533 = vmatpush1.bf16.msra.mxu0 %v430
      %534 = vmatprep.subr.bf16.mxu0 0
      %535 = vmatpush1.bf16.msra.mxu0 %v431
      %536 = vmatprep.subr.bf16.mxu0 0
      %537 = vmatpush1.bf16.msra.mxu0 %v432
      %538 = vmatprep.mubr.bf16.mxu0 %v268
      %539 = vmatmul.mubr.bf16.gmra.mrb[0].mxu0 %v267
      %v540 = vpop.f32.mrb[0].mxu0
      %v541 = vadd.f32 %v500, %v540
      %v542 = vpop.f32.mrb[0].mxu0
      %v543 = vpop.f32.mrb[0].mxu0
      %v544 = vadd.f32 %v503, %v543
      %v545 = vpop.f32.mrb[0].mxu0
      %546 = vdwg.mxu0
      %v547 = vmax.f32 %v541, 0.0
      %v548 = vmax.f32 %v544, 0.0
      %v549 = vpack.c.bf16 %v548, %v547
      %v551 = vunpack.c.l.b16 %v549
      %v552 = vunpack.c.h.b16 %v549
      %v553 = vpack.c.b16 %v551, %v551
      %v554 = vpack.c.b16 %v552, %v552
      %557 = vst [vmem:[%s175] sm:$0xf] %v553
      %558 = vst [vmem:[%s175 + $0x4] sm:$0xf] %v554
      %s559 = smul.u32 2, %s14
      %p560 = scmp.lt.s32.totalorder %s559, 3
      %s561 = scalar_select %p560, %s559, 3
      %s562 = smul.addr %s561, 4
      %s563 = scalar_lea.vmem %s3, %s562
      // Predicated region
      $region33: #{dqnet_forward.4} parent=31 // pred_check
        %p564 = pneg %p100
      $region34: #{dqnet_forward.4} parent=31 // pred_check_branch
        %566 = sbr.rel (%p564) target = $region36
      $region35: #{dqnet_forward.4} parent=31 // pred_region
        %s567 = smul.u32 2, %s14
      $region36: #{dqnet_forward.4} parent=31 // pred_fallthru
        _
    $region32: #{dqnet_forward.4} parent=5 // pred_fallthru
      _
    %p568 = scmp.le.s32.totalorder 2, %s9
    // Predicated region
    $region37: #{dqnet_forward.4} parent=5 // pred_check
      %p569 = pneg %p568
    $region38: #{dqnet_forward.4} parent=5 // pred_check_branch
      %571 = sbr.rel (%p569) target = $region40
    $region39: #{dqnet_forward.4} parent=5 // pred_region
      %s572 = ssub.s32 %s9, 2
      // Predicated region
      $region41: #{dqnet_forward.4} parent=39 // pred_check
        %p573 = pneg %p106
      $region42: #{dqnet_forward.4} parent=39 // pred_check_branch
        %575 = sbr.rel (%p573) target = $region44
      $region43: #{dqnet_forward.4} parent=39 // pred_region
        %s576 = smul.u32 2, %s15
        %p577 = scmp.lt.s32.totalorder %s576, 3
        %s578 = scalar_select %p577, %s576, 3
        %s579 = smul.addr %s578, 4
        %s580 = scalar_lea.vmem %s3, %s579
      $region44: #{dqnet_forward.4} parent=39 // pred_fallthru
        _
    $region40: #{dqnet_forward.4} parent=5 // pred_fallthru
      _
  $region6: #{dqnet_forward.4} parent=0 // loop_footer
    %s13 = sadd.s32 1, %s9
  $region7: #{dqnet_forward.4} parent=0 // loop_footer_branch
    %8 = sbr.rel target = $region3
  $region8: #{dqnet_forward.4} parent=0 // loop_exit
    _

// kernel: dqnet_forward.5
$region0: #{dqnet_forward.5}
  #allocation0 [shape = 'u32[]', space=smem, size = 0x4, offset = 0x4, fixed_abs, tag = 'smem constant byte address 0x4 - core index']
  #allocation1 [shape = 'u32[144,128]{1,0:T(1,128)}', space=vmem, size = 0x12000, scoped, tag = 'internal scratch']
  %s0 = inlined_call_operand.vmem [shape: bf16[2,640], index: 0, kind: input, shape index: {}]
  %s1 = inlined_call_operand.vmem [shape: bf16[640,128], index: 1, kind: input, shape index: {}]
  %s2 = inlined_call_operand.vmem [shape: f32[1,128], index: 2, kind: input, shape index: {}]
  %s3 = inlined_call_operand.vmem [shape: bf16[128,512], index: 3, kind: input, shape index: {}]
  %s4 = inlined_call_operand.vmem [shape: f32[1,512], index: 4, kind: input, shape index: {}]
  %s5 = inlined_call_operand.vmem [shape: bf16[512,128], index: 5, kind: input, shape index: {}]
  %s6 = inlined_call_operand.vmem [shape: f32[1,128], index: 6, kind: input, shape index: {}]
  %s7 = inlined_call_operand.hbm [shape: f32[2,128], index: 7, kind: output, shape index: {}]
  %s8 = sld [smem:[#allocation0]]
  $region38: #{dqnet_forward.5} parent=0
    _
  %s10 = ssub.s32 1, %s8
  %s11 = scalar_select 0, %s10, %s8
  $region1: #{dqnet_forward.5} parent=0
    #allocation2 [shape = 'u8[1024]{0}', space=vmem, size = 0x400, scoped, tag = 'output window, operand 0, single buffered']
    #allocation3 [shape = 's32[1]{0}', space=sflag, size = 0x4, scoped, tag = 'scoped memory for dqnet_forward.5']
    %12 = vsyncpa [#allocation3], 0
    // Predicated region
    $region2: #{dqnet_forward.5} parent=1 // pred_check
      _
    $region3: #{dqnet_forward.5} parent=1 // pred_check_branch
      %14 = sbr.rel (0) target = $region5
    $region4: #{dqnet_forward.5} parent=1 // pred_region
      _
    $region5: #{dqnet_forward.5} parent=1 // pred_fallthru
      _
    // Predicated region
    $region6: #{dqnet_forward.5} parent=1 // pred_check
      _
    $region7: #{dqnet_forward.5} parent=1 // pred_check_branch
      %16 = sbr.rel (0) target = $region9
    $region8: #{dqnet_forward.5} parent=1 // pred_region
      _
    $region9: #{dqnet_forward.5} parent=1 // pred_fallthru
      _
    // Predicated region
    $region10: #{dqnet_forward.5} parent=1 // pred_check
      _
    $region11: #{dqnet_forward.5} parent=1 // pred_check_branch
      %18 = sbr.rel (0) target = $region13
    $region12: #{dqnet_forward.5} parent=1 // pred_region
      _
    $region13: #{dqnet_forward.5} parent=1 // pred_fallthru
      _
    // Predicated region
    $region14: #{dqnet_forward.5} parent=1 // pred_check
      _
    $region15: #{dqnet_forward.5} parent=1 // pred_check_branch
      %20 = sbr.rel (0) target = $region17
    $region16: #{dqnet_forward.5} parent=1 // pred_region
      _
    $region17: #{dqnet_forward.5} parent=1 // pred_fallthru
      _
    // Predicated region
    $region18: #{dqnet_forward.5} parent=1 // pred_check
      _
    $region19: #{dqnet_forward.5} parent=1 // pred_check_branch
      %22 = sbr.rel (0) target = $region21
    $region20: #{dqnet_forward.5} parent=1 // pred_region
      _
    $region21: #{dqnet_forward.5} parent=1 // pred_fallthru
      _
    // Predicated region
    $region22: #{dqnet_forward.5} parent=1 // pred_check
      _
    $region23: #{dqnet_forward.5} parent=1 // pred_check_branch
      %24 = sbr.rel (0) target = $region25
    $region24: #{dqnet_forward.5} parent=1 // pred_region
      _
    $region25: #{dqnet_forward.5} parent=1 // pred_fallthru
      _
    // Predicated region
    $region26: #{dqnet_forward.5} parent=1 // pred_check
      _
    $region27: #{dqnet_forward.5} parent=1 // pred_check_branch
      %26 = sbr.rel (0) target = $region29
    $region28: #{dqnet_forward.5} parent=1 // pred_region
      _
    $region29: #{dqnet_forward.5} parent=1 // pred_fallthru
      _
    %v28 = vld [vmem:[%s0] sm:$0x1f]
    %v29 = vld [vmem:[%s1] sm:$0xf]
    %v30 = vld [vmem:[%s1 + $0x4] sm:$0xf]
    %v31 = vld [vmem:[%s1 + $0x8] sm:$0xf]
    %v32 = vld [vmem:[%s1 + $0xc] sm:$0xf]
    %v33 = vld [vmem:[%s1 + $0x10] sm:$0xf]
    %v34 = vld [vmem:[%s1 + $0x14] sm:$0xf]
    %v35 = vld [vmem:[%s1 + $0x18] sm:$0xf]
    %v36 = vld [vmem:[%s1 + $0x1c] sm:$0xf]
    %v37 = vld [vmem:[%s1 + $0x20] sm:$0xf]
    %v38 = vld [vmem:[%s1 + $0x24] sm:$0xf]
    %v39 = vld [vmem:[%s1 + $0x28] sm:$0xf]
    %v40 = vld [vmem:[%s1 + $0x2c] sm:$0xf]
    %v41 = vld [vmem:[%s1 + $0x30] sm:$0xf]
    %v42 = vld [vmem:[%s1 + $0x34] sm:$0xf]
    %v43 = vld [vmem:[%s1 + $0x38] sm:$0xf]
    %v44 = vld [vmem:[%s1 + $0x3c] sm:$0xf]
    %v45 = vld [vmem:[%s1 + $0x40] sm:$0xf]
    %v46 = vld [vmem:[%s1 + $0x44] sm:$0xf]
    %v47 = vld [vmem:[%s1 + $0x48] sm:$0xf]
    %v48 = vld [vmem:[%s1 + $0x4c] sm:$0xf]
    %v49 = vld [vmem:[%s1 + $0x50] sm:$0xf]
    %v50 = vld [vmem:[%s1 + $0x54] sm:$0xf]
    %v51 = vld [vmem:[%s1 + $0x58] sm:$0xf]
    %v52 = vld [vmem:[%s1 + $0x5c] sm:$0xf]
    %v53 = vld [vmem:[%s1 + $0x60] sm:$0xf]
    %v54 = vld [vmem:[%s1 + $0x64] sm:$0xf]
    %v55 = vld [vmem:[%s1 + $0x68] sm:$0xf]
    %v56 = vld [vmem:[%s1 + $0x6c] sm:$0xf]
    %v57 = vld [vmem:[%s1 + $0x70] sm:$0xf]
    %v58 = vld [vmem:[%s1 + $0x74] sm:$0xf]
    %v59 = vld [vmem:[%s1 + $0x78] sm:$0xf]
    %v60 = vld [vmem:[%s1 + $0x7c] sm:$0xf]
    %v61 = vld [vmem:[%s1 + $0x80] sm:$0xf]
    %v62 = vld [vmem:[%s1 + $0x84] sm:$0xf]
    %v63 = vld [vmem:[%s1 + $0x88] sm:$0xf]
    %v64 = vld [vmem:[%s1 + $0x8c] sm:$0xf]
    %v65 = vld [vmem:[%s1 + $0x90] sm:$0xf]
    %v66 = vld [vmem:[%s1 + $0x94] sm:$0xf]
    %v67 = vld [vmem:[%s1 + $0x98] sm:$0xf]
    %v68 = vld [vmem:[%s1 + $0x9c] sm:$0xf]
    %v69 = vld [vmem:[%s1 + $0xa0] sm:$0xf]
    %v70 = vld [vmem:[%s1 + $0xa4] sm:$0xf]
    %v71 = vld [vmem:[%s1 + $0xa8] sm:$0xf]
    %v72 = vld [vmem:[%s1 + $0xac] sm:$0xf]
    %v73 = vld [vmem:[%s1 + $0xb0] sm:$0xf]
    %v74 = vld [vmem:[%s1 + $0xb4] sm:$0xf]
    %v75 = vld [vmem:[%s1 + $0xb8] sm:$0xf]
    %v76 = vld [vmem:[%s1 + $0xbc] sm:$0xf]
    %v77 = vld [vmem:[%s1 + $0xc0] sm:$0xf]
    %v78 = vld [vmem:[%s1 + $0xc4] sm:$0xf]
    %v79 = vld [vmem:[%s1 + $0xc8] sm:$0xf]
    %v80 = vld [vmem:[%s1 + $0xcc] sm:$0xf]
    %v81 = vld [vmem:[%s1 + $0xd0] sm:$0xf]
    %v82 = vld [vmem:[%s1 + $0xd4] sm:$0xf]
    %v83 = vld [vmem:[%s1 + $0xd8] sm:$0xf]
    %v84 = vld [vmem:[%s1 + $0xdc] sm:$0xf]
    %v85 = vld [vmem:[%s1 + $0xe0] sm:$0xf]
    %v86 = vld [vmem:[%s1 + $0xe4] sm:$0xf]
    %v87 = vld [vmem:[%s1 + $0xe8] sm:$0xf]
    %v88 = vld [vmem:[%s1 + $0xec] sm:$0xf]
    %v89 = vld [vmem:[%s1 + $0xf0] sm:$0xf]
    %v90 = vld [vmem:[%s1 + $0xf4] sm:$0xf]
    %v91 = vld [vmem:[%s1 + $0xf8] sm:$0xf]
    %v92 = vld [vmem:[%s1 + $0xfc] sm:$0xf]
    %v93 = vld [vmem:[%s1 + $0x100] sm:$0xf]
    %v94 = vld [vmem:[%s1 + $0x104] sm:$0xf]
    %v95 = vld [vmem:[%s1 + $0x108] sm:$0xf]
    %v96 = vld [vmem:[%s1 + $0x10c] sm:$0xf]
    %v97 = vld [vmem:[%s1 + $0x110] sm:$0xf]
    %v98 = vld [vmem:[%s1 + $0x114] sm:$0xf]
    %v99 = vld [vmem:[%s1 + $0x118] sm:$0xf]
    %v100 = vld [vmem:[%s1 + $0x11c] sm:$0xf]
    %v101 = vld [vmem:[%s1 + $0x120] sm:$0xf]
    %v102 = vld [vmem:[%s1 + $0x124] sm:$0xf]
    %v103 = vld [vmem:[%s1 + $0x128] sm:$0xf]
    %v104 = vld [vmem:[%s1 + $0x12c] sm:$0xf]
    %v105 = vld [vmem:[%s1 + $0x130] sm:$0xf]
    %v106 = vld [vmem:[%s1 + $0x134] sm:$0xf]
    %v107 = vld [vmem:[%s1 + $0x138] sm:$0xf]
    %v108 = vld [vmem:[%s1 + $0x13c] sm:$0xf]
    %v109 = vld [vmem:[%s2] sm:$0x1]
    %v111 = vlaneseq
    %v112 = vshrl.u32 %v111, 7
    %v113 = vsub.s32 0, %v112
    %v114 = vrot.slane %v109, %v113
    %v117 = vcombine.high %v28, %v28
    %v119 = vunpack.c.l.s4 1966171168
    %v120 = vunpack.c.0.s8 %v119
    %v121 = vlaneseq
    %v122 = vshrl.u32 %v121, 7
    %v123 = vsub.s32 %v120, %v122
    %v124 = vrot.slane %v28, %v123
    %v126 = vunpack.c.l.s4 1966171168
    %v127 = vunpack.c.0.s8 %v126
    %v128 = vlaneseq
    %v129 = vshrl.u32 %v128, 7
    %v130 = vsub.s32 %v127, %v129
    %v131 = vrot.slane %v117, %v130
    %v132 = vcombine.high %v124, %v124
    %v134 = vunpack.c.l.s4 1966171168
    %v135 = vunpack.c.0.s8 %v134
    %v136 = vlaneseq
    %v137 = vshrl.u32 %v136, 7
    %v138 = vsub.s32 %v135, %v137
    %v139 = vrot.slane %v124, %v138
    %v141 = vunpack.c.l.s4 1966171168
    %v142 = vunpack.c.0.s8 %v141
    %v143 = vlaneseq
    %v144 = vshrl.u32 %v143, 7
    %v145 = vsub.s32 %v142, %v144
    %v146 = vrot.slane %v131, %v145
    %v148 = vunpack.c.l.s4 1966171168
    %v149 = vunpack.c.0.s8 %v148
    %v150 = vlaneseq
    %v151 = vshrl.u32 %v150, 7
    %v152 = vsub.s32 %v149, %v151
    %v153 = vrot.slane %v132, %v152
    %v154 = vcombine.high %v139, %v139
    %v155 = vcombine.high %v153, %v153
    %v241 = vunpack.c.l.b16 %v29
    %v242 = vunpack.c.l.b16 %v30
    %v243 = vunpack.c.l.b16 %v31
    %v244 = vunpack.c.l.b16 %v32
    %v245 = vunpack.c.l.b16 %v33
    %v246 = vunpack.c.l.b16 %v34
    %v247 = vunpack.c.l.b16 %v35
    %v248 = vunpack.c.l.b16 %v36
    %v249 = vunpack.c.l.b16 %v37
    %v250 = vunpack.c.l.b16 %v38
    %v251 = vunpack.c.l.b16 %v39
    %v252 = vunpack.c.l.b16 %v40
    %v253 = vunpack.c.l.b16 %v41
    %v254 = vunpack.c.l.b16 %v42
    %v255 = vunpack.c.l.b16 %v43
    %v256 = vunpack.c.l.b16 %v44
    %v257 = vunpack.c.l.b16 %v45
    %v258 = vunpack.c.l.b16 %v46
    %v259 = vunpack.c.l.b16 %v47
    %v260 = vunpack.c.l.b16 %v48
    %v261 = vunpack.c.l.b16 %v49
    %v262 = vunpack.c.l.b16 %v50
    %v263 = vunpack.c.l.b16 %v51
    %v264 = vunpack.c.l.b16 %v52
    %v265 = vunpack.c.l.b16 %v53
    %v266 = vunpack.c.l.b16 %v54
    %v267 = vunpack.c.l.b16 %v55
    %v268 = vunpack.c.l.b16 %v56
    %v269 = vunpack.c.l.b16 %v57
    %v270 = vunpack.c.l.b16 %v58
    %v271 = vunpack.c.l.b16 %v59
    %v272 = vunpack.c.l.b16 %v60
    %v273 = vunpack.c.l.b16 %v61
    %v274 = vunpack.c.l.b16 %v62
    %v275 = vunpack.c.l.b16 %v63
    %v276 = vunpack.c.l.b16 %v64
    %v277 = vunpack.c.l.b16 %v65
    %v278 = vunpack.c.l.b16 %v66
    %v279 = vunpack.c.l.b16 %v67
    %v280 = vunpack.c.l.b16 %v68
    %v281 = vunpack.c.l.b16 %v69
    %v282 = vunpack.c.l.b16 %v70
    %v283 = vunpack.c.l.b16 %v71
    %v284 = vunpack.c.l.b16 %v72
    %v285 = vunpack.c.l.b16 %v73
    %v286 = vunpack.c.l.b16 %v74
    %v287 = vunpack.c.l.b16 %v75
    %v288 = vunpack.c.l.b16 %v76
    %v289 = vunpack.c.l.b16 %v77
    %v290 = vunpack.c.l.b16 %v78
    %v291 = vunpack.c.l.b16 %v79
    %v292 = vunpack.c.l.b16 %v80
    %v293 = vunpack.c.l.b16 %v81
    %v294 = vunpack.c.l.b16 %v82
    %v295 = vunpack.c.l.b16 %v83
    %v296 = vunpack.c.l.b16 %v84
    %v297 = vunpack.c.l.b16 %v85
    %v298 = vunpack.c.l.b16 %v86
    %v299 = vunpack.c.l.b16 %v87
    %v300 = vunpack.c.l.b16 %v88
    %v301 = vunpack.c.l.b16 %v89
    %v302 = vunpack.c.l.b16 %v90
    %v303 = vunpack.c.l.b16 %v91
    %v304 = vunpack.c.l.b16 %v92
    %v305 = vunpack.c.l.b16 %v93
    %v306 = vunpack.c.l.b16 %v94
    %v307 = vunpack.c.l.b16 %v95
    %v308 = vunpack.c.l.b16 %v96
    %v309 = vunpack.c.l.b16 %v97
    %v310 = vunpack.c.l.b16 %v98
    %v311 = vunpack.c.l.b16 %v99
    %v312 = vunpack.c.l.b16 %v100
    %v313 = vunpack.c.l.b16 %v101
    %v314 = vunpack.c.l.b16 %v102
    %v315 = vunpack.c.l.b16 %v103
    %v316 = vunpack.c.l.b16 %v104
    %v317 = vunpack.c.l.b16 %v105
    %v318 = vunpack.c.l.b16 %v106
    %v319 = vunpack.c.l.b16 %v107
    %v320 = vunpack.c.l.b16 %v108
    %v321 = vpack.c.b16 %v242, %v241
    %v322 = vpack.c.b16 %v244, %v243
    %v323 = vpack.c.b16 %v246, %v245
    %v324 = vpack.c.b16 %v248, %v247
    %v325 = vpack.c.b16 %v250, %v249
    %v326 = vpack.c.b16 %v252, %v251
    %v327 = vpack.c.b16 %v254, %v253
    %v328 = vpack.c.b16 %v256, %v255
    %v329 = vpack.c.b16 %v258, %v257
    %v330 = vpack.c.b16 %v260, %v259
    %v331 = vpack.c.b16 %v262, %v261
    %v332 = vpack.c.b16 %v264, %v263
    %v333 = vpack.c.b16 %v266, %v265
    %v334 = vpack.c.b16 %v268, %v267
    %v335 = vpack.c.b16 %v270, %v269
    %v336 = vpack.c.b16 %v272, %v271
    %v337 = vpack.c.b16 %v274, %v273
    %v338 = vpack.c.b16 %v276, %v275
    %v339 = vpack.c.b16 %v278, %v277
    %v340 = vpack.c.b16 %v280, %v279
    %v341 = vpack.c.b16 %v282, %v281
    %v342 = vpack.c.b16 %v284, %v283
    %v343 = vpack.c.b16 %v286, %v285
    %v344 = vpack.c.b16 %v288, %v287
    %v345 = vpack.c.b16 %v290, %v289
    %v346 = vpack.c.b16 %v292, %v291
    %v347 = vpack.c.b16 %v294, %v293
    %v348 = vpack.c.b16 %v296, %v295
    %v349 = vpack.c.b16 %v298, %v297
    %v350 = vpack.c.b16 %v300, %v299
    %v351 = vpack.c.b16 %v302, %v301
    %v352 = vpack.c.b16 %v304, %v303
    %v353 = vpack.c.b16 %v306, %v305
    %v354 = vpack.c.b16 %v308, %v307
    %v355 = vpack.c.b16 %v310, %v309
    %v356 = vpack.c.b16 %v312, %v311
    %v357 = vpack.c.b16 %v314, %v313
    %v358 = vpack.c.b16 %v316, %v315
    %v359 = vpack.c.b16 %v318, %v317
    %v360 = vpack.c.b16 %v320, %v319
    %401 = vmatprep.subr.bf16.mxu0 0
    %402 = vmatpush1.bf16.msra.mxu0 %v321
    %403 = vmatprep.subr.bf16.mxu0 0
    %404 = vmatpush1.bf16.msra.mxu0 %v322
    %405 = vmatprep.subr.bf16.mxu0 0
    %406 = vmatpush1.bf16.msra.mxu0 %v323
    %407 = vmatprep.subr.bf16.mxu0 0
    %408 = vmatpush1.bf16.msra.mxu0 %v324
    %409 = vmatprep.subr.bf16.mxu0 0
    %410 = vmatpush1.bf16.msra.mxu0 %v325
    %411 = vmatprep.subr.bf16.mxu0 0
    %412 = vmatpush1.bf16.msra.mxu0 %v326
    %413 = vmatprep.subr.bf16.mxu0 0
    %414 = vmatpush1.bf16.msra.mxu0 %v327
    %415 = vmatprep.subr.bf16.mxu0 0
    %416 = vmatpush1.bf16.msra.mxu0 %v328
    %417 = vmatprep.subr.bf16.mxu0 0
    %418 = vmatpush1.bf16.msra.mxu0 %v329
    %419 = vmatprep.subr.bf16.mxu0 0
    %420 = vmatpush1.bf16.msra.mxu0 %v330
    %421 = vmatprep.subr.bf16.mxu0 0
    %422 = vmatpush1.bf16.msra.mxu0 %v331
    %423 = vmatprep.subr.bf16.mxu0 0
    %424 = vmatpush1.bf16.msra.mxu0 %v332
    %425 = vmatprep.subr.bf16.mxu0 0
    %426 = vmatpush1.bf16.msra.mxu0 %v333
    %427 = vmatprep.subr.bf16.mxu0 0
    %428 = vmatpush1.bf16.msra.mxu0 %v334
    %429 = vmatprep.subr.bf16.mxu0 0
    %430 = vmatpush1.bf16.msra.mxu0 %v335
    %431 = vmatprep.subr.bf16.mxu0 0
    %432 = vmatpush1.bf16.msra.mxu0 %v336
    %433 = vmatprep.mubr.bf16.mxu0 %v153
    %434 = vmatmul.mubr.bf16.gmra.mrb[0].mxu0 %v139
    %v435 = vpop.f32.mrb[0].mxu0
    %v436 = vadd.f32 %v114, %v435
    %v437 = vpop.f32.mrb[0].mxu0
    %v438 = vpop.f32.mrb[0].mxu0
    %v439 = vpop.f32.mrb[0].mxu0
    %440 = vdwg.mxu0
    %441 = vmatprep.subr.bf16.mxu0 0
    %442 = vmatpush1.bf16.msra.mxu0 %v337
    %443 = vmatprep.subr.bf16.mxu0 0
    %444 = vmatpush1.bf16.msra.mxu0 %v338
    %445 = vmatprep.subr.bf16.mxu0 0
    %446 = vmatpush1.bf16.msra.mxu0 %v339
    %447 = vmatprep.subr.bf16.mxu0 0
    %448 = vmatpush1.bf16.msra.mxu0 %v340
    %449 = vmatprep.subr.bf16.mxu0 0
    %450 = vmatpush1.bf16.msra.mxu0 %v341
    %451 = vmatprep.subr.bf16.mxu0 0
    %452 = vmatpush1.bf16.msra.mxu0 %v342
    %453 = vmatprep.subr.bf16.mxu0 0
    %454 = vmatpush1.bf16.msra.mxu0 %v343
    %455 = vmatprep.subr.bf16.mxu0 0
    %456 = vmatpush1.bf16.msra.mxu0 %v344
    %457 = vmatprep.subr.bf16.mxu0 0
    %458 = vmatpush1.bf16.msra.mxu0 %v345
    %459 = vmatprep.subr.bf16.mxu0 0
    %460 = vmatpush1.bf16.msra.mxu0 %v346
    %461 = vmatprep.subr.bf16.mxu0 0
    %462 = vmatpush1.bf16.msra.mxu0 %v347
    %463 = vmatprep.subr.bf16.mxu0 0
    %464 = vmatpush1.bf16.msra.mxu0 %v348
    %465 = vmatprep.subr.bf16.mxu0 0
    %466 = vmatpush1.bf16.msra.mxu0 %v349
    %467 = vmatprep.subr.bf16.mxu0 0
    %468 = vmatpush1.bf16.msra.mxu0 %v350
    %469 = vmatprep.subr.bf16.mxu0 0
    %470 = vmatpush1.bf16.msra.mxu0 %v351
    %471 = vmatprep.subr.bf16.mxu0 0
    %472 = vmatpush1.bf16.msra.mxu0 %v352
    %473 = vmatprep.mubr.bf16.mxu0 %v155
    %474 = vmatmul.mubr.bf16.gmra.mrb[0].mxu0 %v154
    %v475 = vpop.f32.mrb[0].mxu0
    %v476 = vadd.f32 %v436, %v475
    %v477 = vpop.f32.mrb[0].mxu0
    %v478 = vpop.f32.mrb[0].mxu0
    %v479 = vpop.f32.mrb[0].mxu0
    %480 = vdwg.mxu0
    %481 = vmatprep.subr.bf16.mxu0 0
    %482 = vmatpush1.bf16.msra.mxu0 %v353
    %483 = vmatprep.subr.bf16.mxu0 0
    %484 = vmatpush1.bf16.msra.mxu0 %v354
    %485 = vmatprep.subr.bf16.mxu0 0
    %486 = vmatpush1.bf16.msra.mxu0 %v355
    %487 = vmatprep.subr.bf16.mxu0 0
    %488 = vmatpush1.bf16.msra.mxu0 %v356
    %489 = vmatprep.subr.bf16.mxu0 0
    %490 = vmatpush1.bf16.msra.mxu0 %v357
    %491 = vmatprep.subr.bf16.mxu0 0
    %492 = vmatpush1.bf16.msra.mxu0 %v358
    %493 = vmatprep.subr.bf16.mxu0 0
    %494 = vmatpush1.bf16.msra.mxu0 %v359
    %495 = vmatprep.subr.bf16.mxu0 0
    %496 = vmatpush1.bf16.msra.mxu0 %v360
    %497 = vmatprep.subr.bf16.mxu0 0
    %498 = vmatpush1.bf16.msra.mxu0 0
    %499 = vmatprep.subr.bf16.mxu0 0
    %500 = vmatpush1.bf16.msra.mxu0 0
    %501 = vmatprep.subr.bf16.mxu0 0
    %502 = vmatpush1.bf16.msra.mxu0 0
    %503 = vmatprep.subr.bf16.mxu0 0
    %504 = vmatpush1.bf16.msra.mxu0 0
    %505 = vmatprep.subr.bf16.mxu0 0
    %506 = vmatpush1.bf16.msra.mxu0 0
    %507 = vmatprep.subr.bf16.mxu0 0
    %508 = vmatpush1.bf16.msra.mxu0 0
    %509 = vmatprep.subr.bf16.mxu0 0
    %510 = vmatpush1.bf16.msra.mxu0 0
    %511 = vmatprep.subr.bf16.mxu0 0
    %512 = vmatpush1.bf16.msra.mxu0 0
    %513 = vmatprep.mubr.bf16.mxu0 0
    %514 = vmatmul.mubr.bf16.gmra.mrb[0].mxu0 %v146
    %v515 = vpop.f32.mrb[0].mxu0
    %v516 = vadd.f32 %v476, %v515
    %v517 = vpop.f32.mrb[0].mxu0
    %v518 = vpop.f32.mrb[0].mxu0
    %v519 = vpop.f32.mrb[0].mxu0
    %520 = vdwg.mxu0
    %v521 = vmax.f32 %v516, 0.0
    %v522 = vpack.c.bf16 %v521, %v521
    %v523 = vld [vmem:[%s3] sm:$0xff]
    %v524 = vld [vmem:[%s3 + $0x8] sm:$0xff]
    %v525 = vld [vmem:[%s3 + $0x10] sm:$0xff]
    %v526 = vld [vmem:[%s3 + $0x18] sm:$0xff]
    %v527 = vld [vmem:[%s3 + $0x20] sm:$0xff]
    %v528 = vld [vmem:[%s3 + $0x28] sm:$0xff]
    %v529 = vld [vmem:[%s3 + $0x30] sm:$0xff]
    %v530 = vld [vmem:[%s3 + $0x38] sm:$0xff]
    %v531 = vld [vmem:[%s3 + $0x40] sm:$0xff]
    %v532 = vld [vmem:[%s3 + $0x48] sm:$0xff]
    %v533 = vld [vmem:[%s3 + $0x50] sm:$0xff]
    %v534 = vld [vmem:[%s3 + $0x58] sm:$0xff]
    %v535 = vld [vmem:[%s3 + $0x60] sm:$0xff]
    %v536 = vld [vmem:[%s3 + $0x68] sm:$0xff]
    %v537 = vld [vmem:[%s3 + $0x70] sm:$0xff]
    %v538 = vld [vmem:[%s3 + $0x78] sm:$0xff]
    %v539 = vld [vmem:[%s3 + $0x80] sm:$0xff]
    %v540 = vld [vmem:[%s3 + $0x88] sm:$0xff]
    %v541 = vld [vmem:[%s3 + $0x90] sm:$0xff]
    %v542 = vld [vmem:[%s3 + $0x98] sm:$0xff]
    %v543 = vld [vmem:[%s3 + $0xa0] sm:$0xff]
    %v544 = vld [vmem:[%s3 + $0xa8] sm:$0xff]
    %v545 = vld [vmem:[%s3 + $0xb0] sm:$0xff]
    %v546 = vld [vmem:[%s3 + $0xb8] sm:$0xff]
    %v547 = vld [vmem:[%s3 + $0xc0] sm:$0xff]
    %v548 = vld [vmem:[%s3 + $0xc8] sm:$0xff]
    %v549 = vld [vmem:[%s3 + $0xd0] sm:$0xff]
    %v550 = vld [vmem:[%s3 + $0xd8] sm:$0xff]
    %v551 = vld [vmem:[%s3 + $0xe0] sm:$0xff]
    %v552 = vld [vmem:[%s3 + $0xe8] sm:$0xff]
    %v553 = vld [vmem:[%s3 + $0xf0] sm:$0xff]
    %v554 = vld [vmem:[%s3 + $0xf8] sm:$0xff]
    %v555 = vld [vmem:[%s4] sm:$0xf]
    %v557 = vlaneseq
    %v558 = vshrl.u32 %v557, 7
    %v559 = vsub.s32 0, %v558
    %v560 = vrot.slane %v555, %v559
    %v561 = vlaneseq
    %v562 = vshrl.u32 %v561, 7
    %v563 = vsub.s32 1, %v562
    %v564 = vrot.slane %v555, %v563
    %v565 = vlaneseq
    %v566 = vshrl.u32 %v565, 7
    %v567 = vsub.s32 2, %v566
    %v568 = vrot.slane %v555, %v567
    %v569 = vlaneseq
    %v570 = vshrl.u32 %v569, 7
    %v571 = vsub.s32 3, %v570
    %v572 = vrot.slane %v555, %v571
    %v609 = vunpack.c.l.b16 %v523
    %v610 = vunpack.c.h.b16 %v523
    %v611 = vunpack.c.l.b16 %v524
    %v612 = vunpack.c.h.b16 %v524
    %v613 = vunpack.c.l.b16 %v525
    %v614 = vunpack.c.h.b16 %v525
    %v615 = vunpack.c.l.b16 %v526
    %v616 = vunpack.c.h.b16 %v526
    %v617 = vunpack.c.l.b16 %v527
    %v618 = vunpack.c.h.b16 %v527
    %v619 = vunpack.c.l.b16 %v528
    %v620 = vunpack.c.h.b16 %v528
    %v621 = vunpack.c.l.b16 %v529
    %v622 = vunpack.c.h.b16 %v529
    %v623 = vunpack.c.l.b16 %v530
    %v624 = vunpack.c.h.b16 %v530
    %v625 = vunpack.c.l.b16 %v531
    %v626 = vunpack.c.h.b16 %v531
    %v627 = vunpack.c.l.b16 %v532
    %v628 = vunpack.c.h.b16 %v532
    %v629 = vunpack.c.l.b16 %v533
    %v630 = vunpack.c.h.b16 %v533
    %v631 = vunpack.c.l.b16 %v534
    %v632 = vunpack.c.h.b16 %v534
    %v633 = vunpack.c.l.b16 %v535
    %v634 = vunpack.c.h.b16 %v535
    %v635 = vunpack.c.l.b16 %v536
    %v636 = vunpack.c.h.b16 %v536
    %v637 = vunpack.c.l.b16 %v537
    %v638 = vunpack.c.h.b16 %v537
    %v639 = vunpack.c.l.b16 %v538
    %v640 = vunpack.c.h.b16 %v538
    %v641 = vunpack.c.l.b16 %v539
    %v642 = vunpack.c.h.b16 %v539
    %v643 = vunpack.c.l.b16 %v540
    %v644 = vunpack.c.h.b16 %v540
    %v645 = vunpack.c.l.b16 %v541
    %v646 = vunpack.c.h.b16 %v541
    %v647 = vunpack.c.l.b16 %v542
    %v648 = vunpack.c.h.b16 %v542
    %v649 = vunpack.c.l.b16 %v543
    %v650 = vunpack.c.h.b16 %v543
    %v651 = vunpack.c.l.b16 %v544
    %v652 = vunpack.c.h.b16 %v544
    %v653 = vunpack.c.l.b16 %v545
    %v654 = vunpack.c.h.b16 %v545
    %v655 = vunpack.c.l.b16 %v546
    %v656 = vunpack.c.h.b16 %v546
    %v657 = vunpack.c.l.b16 %v547
    %v658 = vunpack.c.h.b16 %v547
    %v659 = vunpack.c.l.b16 %v548
    %v660 = vunpack.c.h.b16 %v548
    %v661 = vunpack.c.l.b16 %v549
    %v662 = vunpack.c.h.b16 %v549
    %v663 = vunpack.c.l.b16 %v550
    %v664 = vunpack.c.h.b16 %v550
    %v665 = vunpack.c.l.b16 %v551
    %v666 = vunpack.c.h.b16 %v551
    %v667 = vunpack.c.l.b16 %v552
    %v668 = vunpack.c.h.b16 %v552
    %v669 = vunpack.c.l.b16 %v553
    %v670 = vunpack.c.h.b16 %v553
    %v671 = vunpack.c.l.b16 %v554
    %v672 = vunpack.c.h.b16 %v554
    %v673 = vpack.c.b16 %v613, %v609
    %v674 = vpack.c.b16 %v614, %v610
    %v675 = vpack.c.b16 %v615, %v611
    %v676 = vpack.c.b16 %v616, %v612
    %v677 = vpack.c.b16 %v621, %v617
    %v678 = vpack.c.b16 %v622, %v618
    %v679 = vpack.c.b16 %v623, %v619
    %v680 = vpack.c.b16 %v624, %v620
    %v681 = vpack.c.b16 %v629, %v625
    %v682 = vpack.c.b16 %v630, %v626
    %v683 = vpack.c.b16 %v631, %v627
    %v684 = vpack.c.b16 %v632, %v628
    %v685 = vpack.c.b16 %v637, %v633
    %v686 = vpack.c.b16 %v638, %v634
    %v687 = vpack.c.b16 %v639, %v635
    %v688 = vpack.c.b16 %v640, %v636
    %v689 = vpack.c.b16 %v645, %v641
    %v690 = vpack.c.b16 %v646, %v642
    %v691 = vpack.c.b16 %v647, %v643
    %v692 = vpack.c.b16 %v648, %v644
    %v693 = vpack.c.b16 %v653, %v649
    %v694 = vpack.c.b16 %v654, %v650
    %v695 = vpack.c.b16 %v655, %v651
    %v696 = vpack.c.b16 %v656, %v652
    %v697 = vpack.c.b16 %v661, %v657
    %v698 = vpack.c.b16 %v662, %v658
    %v699 = vpack.c.b16 %v663, %v659
    %v700 = vpack.c.b16 %v664, %v660
    %v701 = vpack.c.b16 %v669, %v665
    %v702 = vpack.c.b16 %v670, %v666
    %v703 = vpack.c.b16 %v671, %v667
    %v704 = vpack.c.b16 %v672, %v668
    %737 = vmatprep.subr.bf16.mxu0 %v674
    %738 = vmatpush1.bf16.msra.mxu0 %v673
    %739 = vmatprep.subr.bf16.mxu0 %v678
    %740 = vmatpush1.bf16.msra.mxu0 %v677
    %741 = vmatprep.subr.bf16.mxu0 %v682
    %742 = vmatpush1.bf16.msra.mxu0 %v681
    %743 = vmatprep.subr.bf16.mxu0 %v686
    %744 = vmatpush1.bf16.msra.mxu0 %v685
    %745 = vmatprep.subr.bf16.mxu0 %v690
    %746 = vmatpush1.bf16.msra.mxu0 %v689
    %747 = vmatprep.subr.bf16.mxu0 %v694
    %748 = vmatpush1.bf16.msra.mxu0 %v693
    %749 = vmatprep.subr.bf16.mxu0 %v698
    %750 = vmatpush1.bf16.msra.mxu0 %v697
    %751 = vmatprep.subr.bf16.mxu0 %v702
    %752 = vmatpush1.bf16.msra.mxu0 %v701
    %753 = vmatprep.subr.bf16.mxu0 0
    %754 = vmatpush1.bf16.msra.mxu0 0
    %755 = vmatprep.subr.bf16.mxu0 0
    %756 = vmatpush1.bf16.msra.mxu0 0
    %757 = vmatprep.subr.bf16.mxu0 0
    %758 = vmatpush1.bf16.msra.mxu0 0
    %759 = vmatprep.subr.bf16.mxu0 0
    %760 = vmatpush1.bf16.msra.mxu0 0
    %761 = vmatprep.subr.bf16.mxu0 0
    %762 = vmatpush1.bf16.msra.mxu0 0
    %763 = vmatprep.subr.bf16.mxu0 0
    %764 = vmatpush1.bf16.msra.mxu0 0
    %765 = vmatprep.subr.bf16.mxu0 0
    %766 = vmatpush1.bf16.msra.mxu0 0
    %767 = vmatprep.subr.bf16.mxu0 0
    %768 = vmatpush1.bf16.msra.mxu0 0
    %769 = vmatprep.mubr.bf16.mxu0 0
    %770 = vmatmul.mubr.bf16.gmra.mrb[0].mxu0 %v522
    %v771 = vpop.f32.mrb[0].mxu0
    %v772 = vadd.f32 %v560, %v771
    %v773 = vpop.f32.mrb[0].mxu0
    %v774 = vadd.f32 %v564, %v773
    %v775 = vpop.f32.mrb[0].mxu0
    %v776 = vpop.f32.mrb[0].mxu0
    %777 = vdwg.mxu0
    %778 = vmatprep.subr.bf16.mxu0 %v676
    %779 = vmatpush1.bf16.msra.mxu0 %v675
    %780 = vmatprep.subr.bf16.mxu0 %v680
    %781 = vmatpush1.bf16.msra.mxu0 %v679
    %782 = vmatprep.subr.bf16.mxu0 %v684
    %783 = vmatpush1.bf16.msra.mxu0 %v683
    %784 = vmatprep.subr.bf16.mxu0 %v688
    %785 = vmatpush1.bf16.msra.mxu0 %v687
    %786 = vmatprep.subr.bf16.mxu0 %v692
    %787 = vmatpush1.bf16.msra.mxu0 %v691
    %788 = vmatprep.subr.bf16.mxu0 %v696
    %789 = vmatpush1.bf16.msra.mxu0 %v695
    %790 = vmatprep.subr.bf16.mxu0 %v700
    %791 = vmatpush1.bf16.msra.mxu0 %v699
    %792 = vmatprep.subr.bf16.mxu0 %v704
    %793 = vmatpush1.bf16.msra.mxu0 %v703
    %794 = vmatprep.subr.bf16.mxu0 0
    %795 = vmatpush1.bf16.msra.mxu0 0
    %796 = vmatprep.subr.bf16.mxu0 0
    %797 = vmatpush1.bf16.msra.mxu0 0
    %798 = vmatprep.subr.bf16.mxu0 0
    %799 = vmatpush1.bf16.msra.mxu0 0
    %800 = vmatprep.subr.bf16.mxu0 0
    %801 = vmatpush1.bf16.msra.mxu0 0
    %802 = vmatprep.subr.bf16.mxu0 0
    %803 = vmatpush1.bf16.msra.mxu0 0
    %804 = vmatprep.subr.bf16.mxu0 0
    %805 = vmatpush1.bf16.msra.mxu0 0
    %806 = vmatprep.subr.bf16.mxu0 0
    %807 = vmatpush1.bf16.msra.mxu0 0
    %808 = vmatprep.subr.bf16.mxu0 0
    %809 = vmatpush1.bf16.msra.mxu0 0
    %810 = vmatprep.mubr.bf16.mxu0 0
    %811 = vmatmul.mubr.bf16.gmra.mrb[0].mxu0 %v522
    %v812 = vpop.f32.mrb[0].mxu0
    %v813 = vadd.f32 %v568, %v812
    %v814 = vpop.f32.mrb[0].mxu0
    %v815 = vadd.f32 %v572, %v814
    %v816 = vpop.f32.mrb[0].mxu0
    %v817 = vpop.f32.mrb[0].mxu0
    %818 = vdwg.mxu0
    %vm819 = vcmp.gt.f32.partialorder %v772, 0.0
    %vm820 = vcmp.gt.f32.partialorder %v774, 0.0
    %vm821 = vcmp.gt.f32.partialorder %v813, 0.0
    %vm822 = vcmp.gt.f32.partialorder %v815, 0.0
    %v823 = vmin.f32 %v772, 0.0
    %v824 = vmin.f32 %v774, 0.0
    %v825 = vmin.f32 %v813, 0.0
    %v826 = vmin.f32 %v815, 0.0
    %v827 = vmul.f32 %v823, 1.442695
    %v828 = vpow.pop %v827
    %v829 = vmul.f32 %v824, 1.442695
    %v830 = vpow.pop %v829
    %v831 = vmul.f32 %v825, 1.442695
    %v832 = vpow.pop %v831
    %v833 = vmul.f32 %v826, 1.442695
    %v834 = vpow.pop %v833
    %v835 = vsub.f32 %v828, 1.0
    %v836 = vsub.f32 %v830, 1.0
    %v837 = vsub.f32 %v832, 1.0
    %v838 = vsub.f32 %v834, 1.0
    %v839 = vsel %vm819, %v772, %v835
    %v840 = vsel %vm820, %v774, %v836
    %v841 = vsel %vm821, %v813, %v837
    %v842 = vsel %vm822, %v815, %v838
    %v843 = vpack.c.bf16 %v839, %v839
    %v844 = vpack.c.bf16 %v840, %v840
    %v845 = vpack.c.bf16 %v841, %v841
    %v846 = vpack.c.bf16 %v842, %v842
    %v847 = vld [vmem:[%s5] sm:$0xf]
    %v848 = vld [vmem:[%s5 + $0x4] sm:$0xf]
    %v849 = vld [vmem:[%s5 + $0x8] sm:$0xf]
    %v850 = vld [vmem:[%s5 + $0xc] sm:$0xf]
    %v851 = vld [vmem:[%s5 + $0x10] sm:$0xf]
    %v852 = vld [vmem:[%s5 + $0x14] sm:$0xf]
    %v853 = vld [vmem:[%s5 + $0x18] sm:$0xf]
    %v854 = vld [vmem:[%s5 + $0x1c] sm:$0xf]
    %v855 = vld [vmem:[%s5 + $0x20] sm:$0xf]
    %v856 = vld [vmem:[%s5 + $0x24] sm:$0xf]
    %v857 = vld [vmem:[%s5 + $0x28] sm:$0xf]
    %v858 = vld [vmem:[%s5 + $0x2c] sm:$0xf]
    %v859 = vld [vmem:[%s5 + $0x30] sm:$0xf]
    %v860 = vld [vmem:[%s5 + $0x34] sm:$0xf]
    %v861 = vld [vmem:[%s5 + $0x38] sm:$0xf]
    %v862 = vld [vmem:[%s5 + $0x3c] sm:$0xf]
    %v863 = vld [vmem:[%s5 + $0x40] sm:$0xf]
    %v864 = vld [vmem:[%s5 + $0x44] sm:$0xf]
    %v865 = vld [vmem:[%s5 + $0x48] sm:$0xf]
    %v866 = vld [vmem:[%s5 + $0x4c] sm:$0xf]
    %v867 = vld [vmem:[%s5 + $0x50] sm:$0xf]
    %v868 = vld [vmem:[%s5 + $0x54] sm:$0xf]
    %v869 = vld [vmem:[%s5 + $0x58] sm:$0xf]
    %v870 = vld [vmem:[%s5 + $0x5c] sm:$0xf]
    %v871 = vld [vmem:[%s5 + $0x60] sm:$0xf]
    %v872 = vld [vmem:[%s5 + $0x64] sm:$0xf]
    %v873 = vld [vmem:[%s5 + $0x68] sm:$0xf]
    %v874 = vld [vmem:[%s5 + $0x6c] sm:$0xf]
    %v875 = vld [vmem:[%s5 + $0x70] sm:$0xf]
    %v876 = vld [vmem:[%s5 + $0x74] sm:$0xf]
    %v877 = vld [vmem:[%s5 + $0x78] sm:$0xf]
    %v878 = vld [vmem:[%s5 + $0x7c] sm:$0xf]
    %v879 = vld [vmem:[%s5 + $0x80] sm:$0xf]
    %v880 = vld [vmem:[%s5 + $0x84] sm:$0xf]
    %v881 = vld [vmem:[%s5 + $0x88] sm:$0xf]
    %v882 = vld [vmem:[%s5 + $0x8c] sm:$0xf]
    %v883 = vld [vmem:[%s5 + $0x90] sm:$0xf]
    %v884 = vld [vmem:[%s5 + $0x94] sm:$0xf]
    %v885 = vld [vmem:[%s5 + $0x98] sm:$0xf]
    %v886 = vld [vmem:[%s5 + $0x9c] sm:$0xf]
    %v887 = vld [vmem:[%s5 + $0xa0] sm:$0xf]
    %v888 = vld [vmem:[%s5 + $0xa4] sm:$0xf]
    %v889 = vld [vmem:[%s5 + $0xa8] sm:$0xf]
    %v890 = vld [vmem:[%s5 + $0xac] sm:$0xf]
    %v891 = vld [vmem:[%s5 + $0xb0] sm:$0xf]
    %v892 = vld [vmem:[%s5 + $0xb4] sm:$0xf]
    %v893 = vld [vmem:[%s5 + $0xb8] sm:$0xf]
    %v894 = vld [vmem:[%s5 + $0xbc] sm:$0xf]
    %v895 = vld [vmem:[%s5 + $0xc0] sm:$0xf]
    %v896 = vld [vmem:[%s5 + $0xc4] sm:$0xf]
    %v897 = vld [vmem:[%s5 + $0xc8] sm:$0xf]
    %v898 = vld [vmem:[%s5 + $0xcc] sm:$0xf]
    %v899 = vld [vmem:[%s5 + $0xd0] sm:$0xf]
    %v900 = vld [vmem:[%s5 + $0xd4] sm:$0xf]
    %v901 = vld [vmem:[%s5 + $0xd8] sm:$0xf]
    %v902 = vld [vmem:[%s5 + $0xdc] sm:$0xf]
    %v903 = vld [vmem:[%s5 + $0xe0] sm:$0xf]
    %v904 = vld [vmem:[%s5 + $0xe4] sm:$0xf]
    %v905 = vld [vmem:[%s5 + $0xe8] sm:$0xf]
    %v906 = vld [vmem:[%s5 + $0xec] sm:$0xf]
    %v907 = vld [vmem:[%s5 + $0xf0] sm:$0xf]
    %v908 = vld [vmem:[%s5 + $0xf4] sm:$0xf]
    %v909 = vld [vmem:[%s5 + $0xf8] sm:$0xf]
    %v910 = vld [vmem:[%s5 + $0xfc] sm:$0xf]
    %v911 = vld [vmem:[%s6] sm:$0x1]
    %v913 = vlaneseq
    %v914 = vshrl.u32 %v913, 7
    %v915 = vsub.s32 0, %v914
    %v916 = vrot.slane %v911, %v915
    %v982 = vunpack.c.l.b16 %v847
    %v983 = vunpack.c.l.b16 %v848
    %v984 = vunpack.c.l.b16 %v849
    %v985 = vunpack.c.l.b16 %v850
    %v986 = vunpack.c.l.b16 %v851
    %v987 = vunpack.c.l.b16 %v852
    %v988 = vunpack.c.l.b16 %v853
    %v989 = vunpack.c.l.b16 %v854
    %v990 = vunpack.c.l.b16 %v855
    %v991 = vunpack.c.l.b16 %v856
    %v992 = vunpack.c.l.b16 %v857
    %v993 = vunpack.c.l.b16 %v858
    %v994 = vunpack.c.l.b16 %v859
    %v995 = vunpack.c.l.b16 %v860
    %v996 = vunpack.c.l.b16 %v861
    %v997 = vunpack.c.l.b16 %v862
    %v998 = vunpack.c.l.b16 %v863
    %v999 = vunpack.c.l.b16 %v864
    %v1000 = vunpack.c.l.b16 %v865
    %v1001 = vunpack.c.l.b16 %v866
    %v1002 = vunpack.c.l.b16 %v867
    %v1003 = vunpack.c.l.b16 %v868
    %v1004 = vunpack.c.l.b16 %v869
    %v1005 = vunpack.c.l.b16 %v870
    %v1006 = vunpack.c.l.b16 %v871
    %v1007 = vunpack.c.l.b16 %v872
    %v1008 = vunpack.c.l.b16 %v873
    %v1009 = vunpack.c.l.b16 %v874
    %v1010 = vunpack.c.l.b16 %v875
    %v1011 = vunpack.c.l.b16 %v876
    %v1012 = vunpack.c.l.b16 %v877
    %v1013 = vunpack.c.l.b16 %v878
    %v1014 = vunpack.c.l.b16 %v879
    %v1015 = vunpack.c.l.b16 %v880
    %v1016 = vunpack.c.l.b16 %v881
    %v1017 = vunpack.c.l.b16 %v882
    %v1018 = vunpack.c.l.b16 %v883
    %v1019 = vunpack.c.l.b16 %v884
    %v1020 = vunpack.c.l.b16 %v885
    %v1021 = vunpack.c.l.b16 %v886
    %v1022 = vunpack.c.l.b16 %v887
    %v1023 = vunpack.c.l.b16 %v888
    %v1024 = vunpack.c.l.b16 %v889
    %v1025 = vunpack.c.l.b16 %v890
    %v1026 = vunpack.c.l.b16 %v891
    %v1027 = vunpack.c.l.b16 %v892
    %v1028 = vunpack.c.l.b16 %v893
    %v1029 = vunpack.c.l.b16 %v894
    %v1030 = vunpack.c.l.b16 %v895
    %v1031 = vunpack.c.l.b16 %v896
    %v1032 = vunpack.c.l.b16 %v897
    %v1033 = vunpack.c.l.b16 %v898
    %v1034 = vunpack.c.l.b16 %v899
    %v1035 = vunpack.c.l.b16 %v900
    %v1036 = vunpack.c.l.b16 %v901
    %v1037 = vunpack.c.l.b16 %v902
    %v1038 = vunpack.c.l.b16 %v903
    %v1039 = vunpack.c.l.b16 %v904
    %v1040 = vunpack.c.l.b16 %v905
    %v1041 = vunpack.c.l.b16 %v906
    %v1042 = vunpack.c.l.b16 %v907
    %v1043 = vunpack.c.l.b16 %v908
    %v1044 = vunpack.c.l.b16 %v909
    %v1045 = vunpack.c.l.b16 %v910
    %v1046 = vpack.c.b16 %v983, %v982
    %v1047 = vpack.c.b16 %v985, %v984
    %v1048 = vpack.c.b16 %v987, %v986
    %v1049 = vpack.c.b16 %v989, %v988
    %v1050 = vpack.c.b16 %v991, %v990
    %v1051 = vpack.c.b16 %v993, %v992
    %v1052 = vpack.c.b16 %v995, %v994
    %v1053 = vpack.c.b16 %v997, %v996
    %v1054 = vpack.c.b16 %v999, %v998
    %v1055 = vpack.c.b16 %v1001, %v1000
    %v1056 = vpack.c.b16 %v1003, %v1002
    %v1057 = vpack.c.b16 %v1005, %v1004
    %v1058 = vpack.c.b16 %v1007, %v1006
    %v1059 = vpack.c.b16 %v1009, %v1008
    %v1060 = vpack.c.b16 %v1011, %v1010
    %v1061 = vpack.c.b16 %v1013, %v1012
    %v1062 = vpack.c.b16 %v1015, %v1014
    %v1063 = vpack.c.b16 %v1017, %v1016
    %v1064 = vpack.c.b16 %v1019, %v1018
    %v1065 = vpack.c.b16 %v1021, %v1020
    %v1066 = vpack.c.b16 %v1023, %v1022
    %v1067 = vpack.c.b16 %v1025, %v1024
    %v1068 = vpack.c.b16 %v1027, %v1026
    %v1069 = vpack.c.b16 %v1029, %v1028
    %v1070 = vpack.c.b16 %v1031, %v1030
    %v1071 = vpack.c.b16 %v1033, %v1032
    %v1072 = vpack.c.b16 %v1035, %v1034
    %v1073 = vpack.c.b16 %v1037, %v1036
    %v1074 = vpack.c.b16 %v1039, %v1038
    %v1075 = vpack.c.b16 %v1041, %v1040
    %v1076 = vpack.c.b16 %v1043, %v1042
    %v1077 = vpack.c.b16 %v1045, %v1044
    %1110 = vmatprep.subr.bf16.mxu0 0
    %1111 = vmatpush1.bf16.msra.mxu0 %v1046
    %1112 = vmatprep.subr.bf16.mxu0 0
    %1113 = vmatpush1.bf16.msra.mxu0 %v1047
    %1114 = vmatprep.subr.bf16.mxu0 0
    %1115 = vmatpush1.bf16.msra.mxu0 %v1048
    %1116 = vmatprep.subr.bf16.mxu0 0
    %1117 = vmatpush1.bf16.msra.mxu0 %v1049
    %1118 = vmatprep.subr.bf16.mxu0 0
    %1119 = vmatpush1.bf16.msra.mxu0 %v1050
    %1120 = vmatprep.subr.bf16.mxu0 0
    %1121 = vmatpush1.bf16.msra.mxu0 %v1051
    %1122 = vmatprep.subr.bf16.mxu0 0
    %1123 = vmatpush1.bf16.msra.mxu0 %v1052
    %1124 = vmatprep.subr.bf16.mxu0 0
    %1125 = vmatpush1.bf16.msra.mxu0 %v1053
    %1126 = vmatprep.subr.bf16.mxu0 0
    %1127 = vmatpush1.bf16.msra.mxu0 %v1054
    %1128 = vmatprep.subr.bf16.mxu0 0
    %1129 = vmatpush1.bf16.msra.mxu0 %v1055
    %1130 = vmatprep.subr.bf16.mxu0 0
    %1131 = vmatpush1.bf16.msra.mxu0 %v1056
    %1132 = vmatprep.subr.bf16.mxu0 0
    %1133 = vmatpush1.bf16.msra.mxu0 %v1057
    %1134 = vmatprep.subr.bf16.mxu0 0
    %1135 = vmatpush1.bf16.msra.mxu0 %v1058
    %1136 = vmatprep.subr.bf16.mxu0 0
    %1137 = vmatpush1.bf16.msra.mxu0 %v1059
    %1138 = vmatprep.subr.bf16.mxu0 0
    %1139 = vmatpush1.bf16.msra.mxu0 %v1060
    %1140 = vmatprep.subr.bf16.mxu0 0
    %1141 = vmatpush1.bf16.msra.mxu0 %v1061
    %1142 = vmatprep.mubr.bf16.mxu0 %v844
    %1143 = vmatmul.mubr.bf16.gmra.mrb[0].mxu0 %v843
    %v1144 = vpop.f32.mrb[0].mxu0
    %v1145 = vadd.f32 %v916, %v1144
    %v1146 = vpop.f32.mrb[0].mxu0
    %v1147 = vpop.f32.mrb[0].mxu0
    %v1148 = vpop.f32.mrb[0].mxu0
    %1149 = vdwg.mxu0
    %1150 = vmatprep.subr.bf16.mxu0 0
    %1151 = vmatpush1.bf16.msra.mxu0 %v1062
    %1152 = vmatprep.subr.bf16.mxu0 0
    %1153 = vmatpush1.bf16.msra.mxu0 %v1063
    %1154 = vmatprep.subr.bf16.mxu0 0
    %1155 = vmatpush1.bf16.msra.mxu0 %v1064
    %1156 = vmatprep.subr.bf16.mxu0 0
    %1157 = vmatpush1.bf16.msra.mxu0 %v1065
    %1158 = vmatprep.subr.bf16.mxu0 0
    %1159 = vmatpush1.bf16.msra.mxu0 %v1066
    %1160 = vmatprep.subr.bf16.mxu0 0
    %1161 = vmatpush1.bf16.msra.mxu0 %v1067
    %1162 = vmatprep.subr.bf16.mxu0 0
    %1163 = vmatpush1.bf16.msra.mxu0 %v1068
    %1164 = vmatprep.subr.bf16.mxu0 0
    %1165 = vmatpush1.bf16.msra.mxu0 %v1069
    %1166 = vmatprep.subr.bf16.mxu0 0
    %1167 = vmatpush1.bf16.msra.mxu0 %v1070
    %1168 = vmatprep.subr.bf16.mxu0 0
    %1169 = vmatpush1.bf16.msra.mxu0 %v1071
    %1170 = vmatprep.subr.bf16.mxu0 0
    %1171 = vmatpush1.bf16.msra.mxu0 %v1072
    %1172 = vmatprep.subr.bf16.mxu0 0
    %1173 = vmatpush1.bf16.msra.mxu0 %v1073
    %1174 = vmatprep.subr.bf16.mxu0 0
    %1175 = vmatpush1.bf16.msra.mxu0 %v1074
    %1176 = vmatprep.subr.bf16.mxu0 0
    %1177 = vmatpush1.bf16.msra.mxu0 %v1075
    %1178 = vmatprep.subr.bf16.mxu0 0
    %1179 = vmatpush1.bf16.msra.mxu0 %v1076
    %1180 = vmatprep.subr.bf16.mxu0 0
    %1181 = vmatpush1.bf16.msra.mxu0 %v1077
    %1182 = vmatprep.mubr.bf16.mxu0 %v846
    %1183 = vmatmul.mubr.bf16.gmra.mrb[0].mxu0 %v845
    %v1184 = vpop.f32.mrb[0].mxu0
    %v1185 = vadd.f32 %v1145, %v1184
    %v1186 = vpop.f32.mrb[0].mxu0
    %v1187 = vpop.f32.mrb[0].mxu0
    %v1188 = vpop.f32.mrb[0].mxu0
    %1189 = vdwg.mxu0
    %1190 = vst [vmem:[#allocation2] sm:$0x3] %v1185
    // Predicated region
    $region30: #{dqnet_forward.5} parent=1 // pred_check
      _
    $region31: #{dqnet_forward.5} parent=1 // pred_check_branch
      %1192 = sbr.rel (0) target = $region33
    $region32: #{dqnet_forward.5} parent=1 // pred_region
      %s1194 = ssub.s32 32, 32
      %1195 = vsyncadd [#allocation3], %s1194
      %s1197 = sshll.u32 [#allocation2], 4
      %s1198 = int_to_ptr.vmem [resolvable:$true] %s1197
      %1200 = dma.vmem_to_hbm [thread:$0]  %s1198, 32, %s7, [#allocation3]
    $region33: #{dqnet_forward.5} parent=1 // pred_fallthru
      _
    // Predicated region
    $region34: #{dqnet_forward.5} parent=1 // pred_check
      _
    $region35: #{dqnet_forward.5} parent=1 // pred_check_branch
      %1202 = sbr.rel (0) target = $region37
    $region36: #{dqnet_forward.5} parent=1 // pred_region
      %1203 = dma.done [#allocation3], 32
    $region37: #{dqnet_forward.5} parent=1 // pred_fallthru
      _
    %1204 = vsyncpa [#allocation3], 1

</llo_original>
